<compile_context>
chip_gen: v5e
topology: v5e:2x2
jax: 0.10.0
libtpu: 0.0.40
codegen_flags: <defaults>
</compile_context>

<pallas_src>
import functools

import jax
import jax.numpy as jnp
from jax.experimental import pallas as pl
from jax.experimental.pallas import tpu as pltpu


_EPS = 1e-5
# Row order of the packed per-layer (9, E) bias / LayerNorm slab.
_BIAS_ROWS = ("bq", "bk", "bv", "bo", "g1", "be1", "b2", "g2", "be2")


# ---------------------------------------------------------------------------
# Kernel: one (batch tile, layer) grid step.  Activation stays resident in the
# f32 VMEM scratch across the (inner, "arbitrary") layer axis.
# ---------------------------------------------------------------------------
def _transformer_kernel(x_ref, wattn_ref, wo_ref, w1_ref, w2_ref, be_ref,
                        bf_ref, o_ref, acc_ref, *, num_heads, head_aligned,
                        compute_dtype, approx_recip):
    blk_b, S, E = x_ref.shape
    H = num_heads
    d = E // H
    R = blk_b * S
    cd = compute_dtype
    scale = 1.0 / float(d) ** 0.5
    layer = pl.program_id(1)

    # First layer for this batch tile: pull the input into the resident
    # f32 accumulator (never round-trips HBM between layers).
    @pl.when(layer == 0)
    def _():
        acc_ref[...] = x_ref[...].astype(jnp.float32)

    x2d = acc_ref[...].reshape(R, E)
    xm = x2d.astype(cd)

    be = be_ref[...]                                # (9, E) f32 -- one DMA/layer
    bq, bk, bv = be[0:1], be[1:2], be[2:3]
    bo, g1, be1 = be[3:4], be[4:5], be[5:6]
    b2, g2, be2 = be[6:7], be[7:8], be[8:9]
    b1 = bf_ref[...]                                # (1, F)

    def softmax_rows(s):
        s = s - jnp.max(s, axis=-1, keepdims=True)
        p = jnp.exp(s)
        return p * pl.reciprocal(jnp.sum(p, axis=-1, keepdims=True),
                                 approx=approx_recip)

    if head_aligned:
        # d % 128 == 0: one full-width QKV matmul (K=E, N=3E), lane-aligned
        # head slices, concat head outputs, single full-depth Wo contraction.
        qkv = jnp.dot(xm, wattn_ref[...], preferred_element_type=jnp.float32)
        q = qkv[:, 0:E] + bq
        k = qkv[:, E:2 * E] + bk
        v = qkv[:, 2 * E:3 * E] + bv
        head_outs = []
        for h in range(H):
            sl = slice(h * d, (h + 1) * d)
            qh = q[:, sl].astype(cd).reshape(blk_b, S, d)
            kh = k[:, sl].astype(cd).reshape(blk_b, S, d)
            vh = v[:, sl].astype(cd).reshape(blk_b, S, d)
            s = jnp.einsum("bqd,bkd->bqk", qh, kh,
                           preferred_element_type=jnp.float32) * scale
            p = softmax_rows(s)
            oh = jnp.einsum("bqk,bkd->bqd", p.astype(cd), vh,
                            preferred_element_type=jnp.float32)
            head_outs.append(oh.reshape(R, d))
        concat = jnp.concatenate(head_outs, axis=-1)      # lane-aligned concat
        wo_full = wo_ref[...].reshape(E, E)               # (H,d,E)->(E,E), free
        attn = jnp.dot(concat.astype(cd), wo_full,
                       preferred_element_type=jnp.float32) + bo
    else:
        # d % 128 != 0: per-head projections with wrapper-pre-split weights so
        # no (R, E) activation is sliced at a non-lane-aligned offset.
        attn = None
        for h in range(H):
            sl = slice(h * d, (h + 1) * d)
            qh = jnp.dot(xm, wattn_ref[0, h],
                         preferred_element_type=jnp.float32) + bq[:, sl]
            kh = jnp.dot(xm, wattn_ref[1, h],
                         preferred_element_type=jnp.float32) + bk[:, sl]
            vh = jnp.dot(xm, wattn_ref[2, h],
                         preferred_element_type=jnp.float32) + bv[:, sl]
            qh = qh.astype(cd).reshape(blk_b, S, d)
            kh = kh.astype(cd).reshape(blk_b, S, d)
            vh = vh.astype(cd).reshape(blk_b, S, d)
            s = jnp.einsum("bqd,bkd->bqk", qh, kh,
                           preferred_element_type=jnp.float32) * scale
            p = softmax_rows(s)
            oh = jnp.einsum("bqk,bkd->bqd", p.astype(cd), vh,
                            preferred_element_type=jnp.float32)
            contrib = jnp.dot(oh.reshape(R, d).astype(cd), wo_ref[h],
                              preferred_element_type=jnp.float32)
            attn = contrib if attn is None else attn + contrib
        attn = attn + bo

    def layernorm(y, g, b):
        mu = jnp.mean(y, axis=-1, keepdims=True)
        var = jnp.mean((y - mu) ** 2, axis=-1, keepdims=True)
        return (y - mu) * jax.lax.rsqrt(var + _EPS) * g + b

    # Residual + LayerNorm 1 (f32).
    x1 = layernorm(x2d + attn, g1, be1)

    # Feed-forward: Linear -> ReLU -> Linear.
    h1 = jnp.dot(x1.astype(cd), w1_ref[...],
                 preferred_element_type=jnp.float32) + b1
    h1 = jnp.maximum(h1, 0.0)
    ff = jnp.dot(h1.astype(cd), w2_ref[...],
                 preferred_element_type=jnp.float32) + b2

    # Residual + LayerNorm 2 (f32) -> back into the resident activation.
    y = layernorm(x1 + ff, g2, be2)
    acc_ref[...] = y.reshape(blk_b, S, E)

    @pl.when(layer == pl.num_programs(1) - 1)
    def _():
        o_ref[...] = acc_ref[...].astype(o_ref.dtype)


# ---------------------------------------------------------------------------
# Batch-tile selection: rows/step near 512 (2x256 MXU), working set within the
# VMEM budget, and (when affordable) >= 2 parallel batch steps for v7x.
# ---------------------------------------------------------------------------
def _pick_block_b(B, S, E, F, x_itemsize, fixed_bytes, budget_bytes,
                  target_rows=512, min_rows=256):
    def step_bytes(bb):
        R = bb * S
        act = bb * S * E
        work = (6 * R * E + 2 * bb * S * S + 2 * R * max(E, F)) * 4
        return (fixed_bytes
                + 2 * act * x_itemsize        # x block (double-buffered)
                + act * 4                     # resident f32 activation scratch
                + 2 * act * x_itemsize        # output block (double-buffered)
                + work)

    divisors = [c for c in range(1, B + 1) if B % c == 0]
    fitting = [c for c in divisors if step_bytes(c) <= budget_bytes] or [1]
    # TODO(synk): if even block_b=1 overflows (very long S), a flash-style
    #             q-tile loop over S inside the kernel is needed.
    cands = [c for c in fitting if c * S <= max(target_rows, S)] or [min(fitting)]
    block_b = max(cands)
    if B // block_b < 2:
        smaller = [c for c in fitting if c < block_b and c * S >= min_rows]
        if smaller:
            block_b = max(smaller)
    return block_b


# ---------------------------------------------------------------------------
# Wrapper: stacks per-layer weights (layout plumbing is free on the host side)
# and launches a single pallas_call over the (batch-tile, layer) grid.
# ---------------------------------------------------------------------------
def transformer(x, layer_params, num_heads, *, compute_dtype=jnp.float32,
                block_b=None, vmem_budget_bytes=56 * 1024 * 1024):
    """Apply the transformer stack.  x: (B, S, E), batch_first."""
    B, S, E = x.shape
    L = len(layer_params)
    H = num_heads
    assert E % H == 0, "embed_dim must be divisible by num_heads"
    d = E // H
    F = layer_params[0]["w1"].shape[1]          # dim_feedforward (== E here)
    cd = jnp.dtype(compute_dtype)
    head_aligned = (d % 128 == 0)
    approx_recip = bool(cd == jnp.dtype(jnp.bfloat16))

    def stack(name):
        return jnp.stack([p[name] for p in layer_params])

    wq, wk, wv = stack("wq"), stack("wk"), stack("wv")          # (L, E, E)
    if head_aligned:
        w_attn = jnp.concatenate([wq, wk, wv], axis=-1).astype(cd)   # (L,E,3E)
        wattn_spec = pl.BlockSpec((None, E, 3 * E), lambda b, l: (l, 0, 0))
    else:
        def split_heads(w):                       # (L, E, E) -> (L, H, E, d)
            return w.reshape(L, E, H, d).transpose(0, 2, 1, 3)
        w_attn = jnp.stack(
            [split_heads(wq), split_heads(wk), split_heads(wv)],
            axis=1).astype(cd)                                   # (L,3,H,E,d)
        wattn_spec = pl.BlockSpec((None, 3, H, E, d),
                                  lambda b, l: (l, 0, 0, 0, 0))
    wo = stack("wo").reshape(L, H, d, E).astype(cd)              # (L,H,d,E)
    w1 = stack("w1").astype(cd)                                  # (L,E,F)
    w2 = stack("w2").astype(cd)                                  # (L,F,E)
    bias_e = jnp.stack(
        [jnp.concatenate([p[k] for k in _BIAS_ROWS], axis=0)
         for p in layer_params]).astype(jnp.float32)             # (L,9,E)
    bias_f = stack("b1").astype(jnp.float32)                     # (L,1,F)

    w_layer_bytes = int((w_attn.size + wo.size + w1.size + w2.size) // L
                        * cd.itemsize)
    bias_layer_bytes = int((bias_e.size + bias_f.size) // L * 4)
    fixed = 2 * (w_layer_bytes + bias_layer_bytes)   # layer l+1 prefetch buffer

    if block_b is None:
        block_b = _pick_block_b(B, S, E, F, x.dtype.itemsize, fixed,
                                vmem_budget_bytes)
    assert B % block_b == 0, "block_b must divide the batch size"

    R = block_b * S
    act = block_b * S * E
    work = (6 * R * E + 2 * block_b * S * S + 2 * R * max(E, F)) * 4
    est = fixed + 4 * act * x.dtype.itemsize + act * 4 + work + (4 << 20)
    vmem_limit = int(min(max(est, 32 << 20), 100 << 20))

    flops = int(L * (2 * B * S * E * (4 * E + 2 * F) + 4 * B * S * S * E))
    transcendentals = int(L * (B * H * S * S + 2 * B * S))
    bytes_accessed = int(2 * B * S * E * x.dtype.itemsize
                         + L * (w_layer_bytes + bias_layer_bytes))

    grid = (B // block_b, L)

    return pl.pallas_call(
        functools.partial(
            _transformer_kernel,
            num_heads=H,
            head_aligned=head_aligned,
            compute_dtype=cd,
            approx_recip=approx_recip,
        ),
        out_shape=jax.ShapeDtypeStruct((B, S, E), x.dtype),
        grid_spec=pltpu.PrefetchScalarGridSpec(
            num_scalar_prefetch=0,
            grid=grid,
            in_specs=[
                pl.BlockSpec((block_b, S, E), lambda b, l: (b, 0, 0)),   # x
                wattn_spec,                                              # QKV w
                pl.BlockSpec((None, H, d, E), lambda b, l: (l, 0, 0, 0)),  # Wo
                pl.BlockSpec((None, E, F), lambda b, l: (l, 0, 0)),      # W1
                pl.BlockSpec((None, F, E), lambda b, l: (l, 0, 0)),      # W2
                pl.BlockSpec((None, len(_BIAS_ROWS), E),
                             lambda b, l: (l, 0, 0)),                    # biases
                pl.BlockSpec((None, 1, F), lambda b, l: (l, 0, 0)),      # b1
            ],
            out_specs=pl.BlockSpec((block_b, S, E), lambda b, l: (b, 0, 0)),
            scratch_shapes=[pltpu.VMEM((block_b, S, E), jnp.float32)],
        ),
        compiler_params=pltpu.CompilerParams(
            dimension_semantics=("parallel", "arbitrary"),
            vmem_limit_bytes=vmem_limit,
        ),
        cost_estimate=pl.CostEstimate(
            flops=flops,
            transcendentals=transcendentals,
            bytes_accessed=bytes_accessed,
        ),
    )(x, w_attn, wo, w1, w2, bias_e, bias_f)


# ---------------------------------------------------------------------------
# Pure-JAX reference (mirrors the PyTorch forward pass exactly, in f32).
# ---------------------------------------------------------------------------
def _layer_ref(x, p, num_heads):
    B, S, E = x.shape
    d = E // num_heads
    scale = 1.0 / (d ** 0.5)
    q = x @ p["wq"] + p["bq"][0]
    k = x @ p["wk"] + p["bk"][0]
    v = x @ p["wv"] + p["bv"][0]

    def split(t):  # (B, S, E) -> (B, H, S, d)
        return t.reshape(B, S, num_heads, d).transpose(0, 2, 1, 3)

    qh, kh, vh = split(q), split(k), split(v)
    s = jnp.einsum("bhqd,bhkd->bhqk", qh, kh) * scale
    p_attn = jax.nn.softmax(s, axis=-1)
    o = jnp.einsum("bhqk,bhkd->bhqd", p_attn, vh)
    o = o.transpose(0, 2, 1, 3).reshape(B, S, E)
    attn = o @ p["wo"] + p["bo"][0]

    def layernorm(y, g, b):
        mu = jnp.mean(y, axis=-1, keepdims=True)
        var = jnp.mean((y - mu) ** 2, axis=-1, keepdims=True)
        return (y - mu) * jax.lax.rsqrt(var + _EPS) * g[0] + b[0]

    x1 = layernorm(x + attn, p["g1"], p["be1"])
    ff = jnp.maximum(x1 @ p["w1"] + p["b1"][0], 0.0) @ p["w2"] + p["b2"][0]
    return layernorm(x1 + ff, p["g2"], p["be2"])


def _ref(x, layer_params, num_heads):
    for p in layer_params:
        x = _layer_ref(x, p, num_heads)
    return x


# ---------------------------------------------------------------------------
def make_layer_params(key, embed_dim):
    ks = jax.random.split(key, 16)
    E = embed_dim

    def n(k, shape, s=0.05):
        return (s * jax.random.normal(k, shape)).astype(jnp.float32)

    return {
        "wq": n(ks[0], (E, E)), "wk": n(ks[1], (E, E)), "wv": n(ks[2], (E, E)),
        "bq": n(ks[3], (1, E)), "bk": n(ks[4], (1, E)), "bv": n(ks[5], (1, E)),
        "wo": n(ks[6], (E, E)), "bo": n(ks[7], (1, E)),
        "g1": jnp.ones((1, E), jnp.float32) + n(ks[8], (1, E), 0.01),
        "be1": n(ks[9], (1, E), 0.01),
        "w1": n(ks[10], (E, E)), "b1": n(ks[11], (1, E)),
        "w2": n(ks[12], (E, E)), "b2": n(ks[13], (1, E)),
        "g2": jnp.ones((1, E), jnp.float32) + n(ks[14], (1, E), 0.01),
        "be2": n(ks[15], (1, E), 0.01),
    }


if __name__ == "__main__":
    root = jax.random.PRNGKey(0)
    k_cfg1, k_cfg2 = jax.random.split(root, 2)

    # --- Config 1: head_dim % 128 != 0 -> per-head pre-split weight path. ---
    B, S, E, H, L = 2, 8, 32, 4, 2
    kx, *layer_keys = jax.random.split(k_cfg1, L + 1)
    x = jax.random.normal(kx, (B, S, E), dtype=jnp.float32)
    params = [make_layer_params(k, E) for k in layer_keys]

    with jax.default_matmul_precision("highest"):
        ref = _ref(x, params, H)

    # f32 MXU path: tight tolerance vs the PyTorch-equivalent reference.
    out = jax.block_until_ready(transformer(x, params, H))
    assert out.shape == (B, S, E)
    assert jnp.allclose(out, ref, rtol=1e-4, atol=1e-4), "f32 path mismatch"

    # bf16-weight MXU fast path: f32 accumulation, looser tolerance.
    out_bf16 = jax.block_until_ready(
        transformer(x, params, H, compute_dtype=jnp.bfloat16))
    assert out_bf16.shape == (B, S, E)
    assert jnp.allclose(out_bf16, ref, rtol=5e-2, atol=5e-2), "bf16 path mismatch"

    # --- Config 2: head_dim % 128 == 0 -> fused QKV + full-depth Wo path. ---
    B2, S2, E2, H2, L2 = 2, 8, 256, 2, 1
    k2x, *k2 = jax.random.split(k_cfg2, L2 + 1)
    x2 = jax.random.normal(k2x, (B2, S2, E2), dtype=jnp.float32)
    params2 = [make_layer_params(k, E2) for k in k2]
    with jax.default_matmul_precision("highest"):
        ref2 = _ref(x2, params2, H2)
    out2 = jax.block_until_ready(transformer(x2, params2, H2))
    assert out2.shape == (B2, S2, E2)
    assert jnp.allclose(out2, ref2, rtol=1e-3, atol=1e-3), "aligned path mismatch"

    print("KERNEL_OK")
</pallas_src>

<mosaic_0001>
module attributes {stable_mosaic.version = 11 : i64} {
  func.func @_transformer_kernel(%arg0: i32, %arg1: i32, %arg2: memref<2x8x32xf32, #tpu.memory_space<vmem>>, %arg3: memref<1x3x4x32x8xf32, #tpu.memory_space<vmem>>, %arg4: memref<1x4x8x32xf32, #tpu.memory_space<vmem>>, %arg5: memref<1x32x32xf32, #tpu.memory_space<vmem>>, %arg6: memref<1x32x32xf32, #tpu.memory_space<vmem>>, %arg7: memref<1x9x32xf32, #tpu.memory_space<vmem>>, %arg8: memref<1x1x32xf32, #tpu.memory_space<vmem>>, %arg9: memref<2x8x32xf32, #tpu.memory_space<vmem>>, %arg10: memref<2x8x32xf32, #tpu.memory_space<vmem>>) attributes {dimension_semantics = [#tpu.dimension_semantics<parallel>, #tpu.dimension_semantics<arbitrary>], iteration_bounds = array<i64: 1, 2>, scalar_prefetch = 0 : i64, scratch_operands = 1 : i64, tpu.core_type = #tpu.core_type<tc>, window_params = [{transform_indices = @transform_0, window_bounds = array<i64: 2, 8, 32>}, {transform_indices = @transform_1, window_bounds = array<i64: 1, 3, 4, 32, 8>}, {transform_indices = @transform_2, window_bounds = array<i64: 1, 4, 8, 32>}, {transform_indices = @transform_3, window_bounds = array<i64: 1, 32, 32>}, {transform_indices = @transform_4, window_bounds = array<i64: 1, 32, 32>}, {transform_indices = @transform_5, window_bounds = array<i64: 1, 9, 32>}, {transform_indices = @transform_6, window_bounds = array<i64: 1, 1, 32>}, {transform_indices = @transform_7, window_bounds = array<i64: 2, 8, 32>}]} {
    %c0_i32 = arith.constant 0 : i32
    %0 = arith.cmpi eq, %arg1, %c0_i32 : i32
    %1 = arith.extui %0 : i1 to i32
    %c0_i32_0 = arith.constant 0 : i32
    %2 = arith.cmpi ne, %1, %c0_i32_0 : i32
    scf.if %2 {
      %c0_140 = arith.constant 0 : index
      %c0_141 = arith.constant 0 : index
      %c0_142 = arith.constant 0 : index
      %242 = vector.load %arg2[%c0_140, %c0_141, %c0_142] : memref<2x8x32xf32, #tpu.memory_space<vmem>>, vector<2x8x32xf32>
      %c0_143 = arith.constant 0 : index
      %c0_144 = arith.constant 0 : index
      %c0_145 = arith.constant 0 : index
      %243 = vector.load %arg10[%c0_143, %c0_144, %c0_145] : memref<2x8x32xf32, #tpu.memory_space<vmem>>, vector<2x8x32xf32>
      tpu.vector_store %arg10[%c0_143, %c0_144, %c0_145], %242 {strides = array<i32>} : memref<2x8x32xf32, #tpu.memory_space<vmem>>, vector<2x8x32xf32>,
    } else {
    }
    %c0 = arith.constant 0 : index
    %c0_1 = arith.constant 0 : index
    %c0_2 = arith.constant 0 : index
    %3 = vector.load %arg10[%c0, %c0_1, %c0_2] : memref<2x8x32xf32, #tpu.memory_space<vmem>>, vector<2x8x32xf32>
    %4 = vector.shape_cast %3 : vector<2x8x32xf32> to vector<16x32xf32>
    %c0_3 = arith.constant 0 : index
    %c0_4 = arith.constant 0 : index
    %c0_5 = arith.constant 0 : index
    %5 = vector.load %arg7[%c0_3, %c0_4, %c0_5] : memref<1x9x32xf32, #tpu.memory_space<vmem>>, vector<1x9x32xf32>
    %6 = vector.shape_cast %5 : vector<1x9x32xf32> to vector<9x32xf32>
    %7 = vector.extract_strided_slice %6 {offsets = [0, 0], sizes = [1, 32], strides = [1, 1]} : vector<9x32xf32> to vector<1x32xf32>
    %8 = vector.extract_strided_slice %6 {offsets = [1, 0], sizes = [1, 32], strides = [1, 1]} : vector<9x32xf32> to vector<1x32xf32>
    %9 = vector.extract_strided_slice %6 {offsets = [2, 0], sizes = [1, 32], strides = [1, 1]} : vector<9x32xf32> to vector<1x32xf32>
    %10 = vector.extract_strided_slice %6 {offsets = [3, 0], sizes = [1, 32], strides = [1, 1]} : vector<9x32xf32> to vector<1x32xf32>
    %11 = vector.extract_strided_slice %6 {offsets = [4, 0], sizes = [1, 32], strides = [1, 1]} : vector<9x32xf32> to vector<1x32xf32>
    %12 = vector.extract_strided_slice %6 {offsets = [5, 0], sizes = [1, 32], strides = [1, 1]} : vector<9x32xf32> to vector<1x32xf32>
    %13 = vector.extract_strided_slice %6 {offsets = [6, 0], sizes = [1, 32], strides = [1, 1]} : vector<9x32xf32> to vector<1x32xf32>
    %14 = vector.extract_strided_slice %6 {offsets = [7, 0], sizes = [1, 32], strides = [1, 1]} : vector<9x32xf32> to vector<1x32xf32>
    %15 = vector.extract_strided_slice %6 {offsets = [8, 0], sizes = [1, 32], strides = [1, 1]} : vector<9x32xf32> to vector<1x32xf32>
    %c0_6 = arith.constant 0 : index
    %c0_7 = arith.constant 0 : index
    %c0_8 = arith.constant 0 : index
    %16 = vector.load %arg8[%c0_6, %c0_7, %c0_8] : memref<1x1x32xf32, #tpu.memory_space<vmem>>, vector<1x1x32xf32>
    %17 = vector.shape_cast %16 : vector<1x1x32xf32> to vector<1x32xf32>
    %c0_9 = arith.constant 0 : index
    %c0_10 = arith.constant 0 : index
    %c0_11 = arith.constant 0 : index
    %c0_12 = arith.constant 0 : index
    %c0_13 = arith.constant 0 : index
    %18 = vector.load %arg3[%c0_9, %c0_10, %c0_11, %c0_12, %c0_13] : memref<1x3x4x32x8xf32, #tpu.memory_space<vmem>>, vector<1x1x1x32x8xf32>
    %19 = vector.shape_cast %18 : vector<1x1x1x32x8xf32> to vector<32x8xf32>
    %cst = arith.constant dense<0.000000e+00> : vector<16x8xf32>
    %20 = tpu.matmul %4, %19, %cst {dimension_numbers = #tpu.dot_dimension_numbers<[1], [0], [0], [1], [0, 0, 1, 1], [], []>} : vector<16x32xf32>, vector<32x8xf32>, vector<16x8xf32> -> vector<16x8xf32>
    %21 = vector.extract_strided_slice %7 {offsets = [0, 0], sizes = [1, 8], strides = [1, 1]} : vector<1x32xf32> to vector<1x8xf32>
    %22 = vector.broadcast %21 : vector<1x8xf32> to vector<16x8xf32>
    %23 = arith.addf %20, %22 : vector<16x8xf32>
    %c0_14 = arith.constant 0 : index
    %c1 = arith.constant 1 : index
    %c0_15 = arith.constant 0 : index
    %c0_16 = arith.constant 0 : index
    %c0_17 = arith.constant 0 : index
    %24 = vector.load %arg3[%c0_14, %c1, %c0_15, %c0_16, %c0_17] : memref<1x3x4x32x8xf32, #tpu.memory_space<vmem>>, vector<1x1x1x32x8xf32>
    %25 = vector.shape_cast %24 : vector<1x1x1x32x8xf32> to vector<32x8xf32>
    %cst_18 = arith.constant dense<0.000000e+00> : vector<16x8xf32>
    %26 = tpu.matmul %4, %25, %cst_18 {dimension_numbers = #tpu.dot_dimension_numbers<[1], [0], [0], [1], [0, 0, 1, 1], [], []>} : vector<16x32xf32>, vector<32x8xf32>, vector<16x8xf32> -> vector<16x8xf32>
    %27 = vector.extract_strided_slice %8 {offsets = [0, 0], sizes = [1, 8], strides = [1, 1]} : vector<1x32xf32> to vector<1x8xf32>
    %28 = vector.broadcast %27 : vector<1x8xf32> to vector<16x8xf32>
    %29 = arith.addf %26, %28 : vector<16x8xf32>
    %c0_19 = arith.constant 0 : index
    %c2 = arith.constant 2 : index
    %c0_20 = arith.constant 0 : index
    %c0_21 = arith.constant 0 : index
    %c0_22 = arith.constant 0 : index
    %30 = vector.load %arg3[%c0_19, %c2, %c0_20, %c0_21, %c0_22] : memref<1x3x4x32x8xf32, #tpu.memory_space<vmem>>, vector<1x1x1x32x8xf32>
    %31 = vector.shape_cast %30 : vector<1x1x1x32x8xf32> to vector<32x8xf32>
    %cst_23 = arith.constant dense<0.000000e+00> : vector<16x8xf32>
    %32 = tpu.matmul %4, %31, %cst_23 {dimension_numbers = #tpu.dot_dimension_numbers<[1], [0], [0], [1], [0, 0, 1, 1], [], []>} : vector<16x32xf32>, vector<32x8xf32>, vector<16x8xf32> -> vector<16x8xf32>
    %33 = vector.extract_strided_slice %9 {offsets = [0, 0], sizes = [1, 8], strides = [1, 1]} : vector<1x32xf32> to vector<1x8xf32>
    %34 = vector.broadcast %33 : vector<1x8xf32> to vector<16x8xf32>
    %35 = arith.addf %32, %34 : vector<16x8xf32>
    %36 = vector.shape_cast %23 : vector<16x8xf32> to vector<2x8x8xf32>
    %37 = vector.shape_cast %29 : vector<16x8xf32> to vector<2x8x8xf32>
    %38 = vector.shape_cast %35 : vector<16x8xf32> to vector<2x8x8xf32>
    "tpu.trace_start"() <{level = 10 : i32, message = "bqd,bkd->bqk"}> : () -> ()
    %cst_24 = arith.constant dense<0.000000e+00> : vector<2x8x8xf32>
    %39 = tpu.matmul %36, %37, %cst_24 {dimension_numbers = #tpu.dot_dimension_numbers<[2], [2], [1], [1], [0, 0, 0, 1, 1, 1], [0], [0]>} : vector<2x8x8xf32>, vector<2x8x8xf32>, vector<2x8x8xf32> -> vector<2x8x8xf32>
    "tpu.trace_stop"() : () -> ()
    %cst_25 = arith.constant 0.353553385 : f32
    %40 = vector.broadcast %cst_25 : f32 to vector<2x8x8xf32>
    %41 = arith.mulf %39, %40 : vector<2x8x8xf32>
    %cst_26 = arith.constant dense<0xFF800000> : vector<2x8xf32>
    %42 = vector.multi_reduction <maximumf>, %41, %cst_26 [2] : vector<2x8x8xf32> to vector<2x8xf32>
    %43 = vector.shape_cast %42 : vector<2x8xf32> to vector<2x8x1xf32>
    %44 = vector.broadcast %43 : vector<2x8x1xf32> to vector<2x8x8xf32>
    %45 = arith.subf %41, %44 : vector<2x8x8xf32>
    %46 = math.exp %45 : vector<2x8x8xf32>
    %cst_27 = arith.constant dense<0.000000e+00> : vector<2x8xf32>
    %47 = vector.multi_reduction <add>, %46, %cst_27 [2] : vector<2x8x8xf32> to vector<2x8xf32>
    %48 = vector.shape_cast %47 : vector<2x8xf32> to vector<2x8x1xf32>
    %49 = tpu.reciprocal %48 : vector<2x8x1xf32> -> vector<2x8x1xf32>
    %50 = vector.broadcast %49 : vector<2x8x1xf32> to vector<2x8x8xf32>
    %51 = arith.mulf %46, %50 : vector<2x8x8xf32>
    "tpu.trace_start"() <{level = 10 : i32, message = "bqk,bkd->bqd"}> : () -> ()
    %cst_28 = arith.constant dense<0.000000e+00> : vector<2x8x8xf32>
    %52 = tpu.matmul %51, %38, %cst_28 {dimension_numbers = #tpu.dot_dimension_numbers<[2], [1], [1], [2], [0, 0, 0, 1, 1, 2], [0], [0]>} : vector<2x8x8xf32>, vector<2x8x8xf32>, vector<2x8x8xf32> -> vector<2x8x8xf32>
    "tpu.trace_stop"() : () -> ()
    %53 = vector.shape_cast %52 : vector<2x8x8xf32> to vector<16x8xf32>
    %c0_29 = arith.constant 0 : index
    %c0_30 = arith.constant 0 : index
    %c0_31 = arith.constant 0 : index
    %c0_32 = arith.constant 0 : index
    %54 = vector.load %arg4[%c0_29, %c0_30, %c0_31, %c0_32] : memref<1x4x8x32xf32, #tpu.memory_space<vmem>>, vector<1x1x8x32xf32>
    %55 = vector.shape_cast %54 : vector<1x1x8x32xf32> to vector<8x32xf32>
    %cst_33 = arith.constant dense<0.000000e+00> : vector<16x32xf32>
    %56 = tpu.matmul %53, %55, %cst_33 {dimension_numbers = #tpu.dot_dimension_numbers<[1], [0], [0], [1], [0, 0, 1, 1], [], []>} : vector<16x8xf32>, vector<8x32xf32>, vector<16x32xf32> -> vector<16x32xf32>
    %c0_34 = arith.constant 0 : index
    %c0_35 = arith.constant 0 : index
    %c1_36 = arith.constant 1 : index
    %c0_37 = arith.constant 0 : index
    %c0_38 = arith.constant 0 : index
    %57 = vector.load %arg3[%c0_34, %c0_35, %c1_36, %c0_37, %c0_38] : memref<1x3x4x32x8xf32, #tpu.memory_space<vmem>>, vector<1x1x1x32x8xf32>
    %58 = vector.shape_cast %57 : vector<1x1x1x32x8xf32> to vector<32x8xf32>
    %cst_39 = arith.constant dense<0.000000e+00> : vector<16x8xf32>
    %59 = tpu.matmul %4, %58, %cst_39 {dimension_numbers = #tpu.dot_dimension_numbers<[1], [0], [0], [1], [0, 0, 1, 1], [], []>} : vector<16x32xf32>, vector<32x8xf32>, vector<16x8xf32> -> vector<16x8xf32>
    %60 = vector.extract_strided_slice %7 {offsets = [0, 8], sizes = [1, 8], strides = [1, 1]} : vector<1x32xf32> to vector<1x8xf32>
    %61 = vector.broadcast %60 : vector<1x8xf32> to vector<16x8xf32>
    %62 = arith.addf %59, %61 : vector<16x8xf32>
    %c0_40 = arith.constant 0 : index
    %c1_41 = arith.constant 1 : index
    %c1_42 = arith.constant 1 : index
    %c0_43 = arith.constant 0 : index
    %c0_44 = arith.constant 0 : index
    %63 = vector.load %arg3[%c0_40, %c1_41, %c1_42, %c0_43, %c0_44] : memref<1x3x4x32x8xf32, #tpu.memory_space<vmem>>, vector<1x1x1x32x8xf32>
    %64 = vector.shape_cast %63 : vector<1x1x1x32x8xf32> to vector<32x8xf32>
    %cst_45 = arith.constant dense<0.000000e+00> : vector<16x8xf32>
    %65 = tpu.matmul %4, %64, %cst_45 {dimension_numbers = #tpu.dot_dimension_numbers<[1], [0], [0], [1], [0, 0, 1, 1], [], []>} : vector<16x32xf32>, vector<32x8xf32>, vector<16x8xf32> -> vector<16x8xf32>
    %66 = vector.extract_strided_slice %8 {offsets = [0, 8], sizes = [1, 8], strides = [1, 1]} : vector<1x32xf32> to vector<1x8xf32>
    %67 = vector.broadcast %66 : vector<1x8xf32> to vector<16x8xf32>
    %68 = arith.addf %65, %67 : vector<16x8xf32>
    %c0_46 = arith.constant 0 : index
    %c2_47 = arith.constant 2 : index
    %c1_48 = arith.constant 1 : index
    %c0_49 = arith.constant 0 : index
    %c0_50 = arith.constant 0 : index
    %69 = vector.load %arg3[%c0_46, %c2_47, %c1_48, %c0_49, %c0_50] : memref<1x3x4x32x8xf32, #tpu.memory_space<vmem>>, vector<1x1x1x32x8xf32>
    %70 = vector.shape_cast %69 : vector<1x1x1x32x8xf32> to vector<32x8xf32>
    %cst_51 = arith.constant dense<0.000000e+00> : vector<16x8xf32>
    %71 = tpu.matmul %4, %70, %cst_51 {dimension_numbers = #tpu.dot_dimension_numbers<[1], [0], [0], [1], [0, 0, 1, 1], [], []>} : vector<16x32xf32>, vector<32x8xf32>, vector<16x8xf32> -> vector<16x8xf32>
    %72 = vector.extract_strided_slice %9 {offsets = [0, 8], sizes = [1, 8], strides = [1, 1]} : vector<1x32xf32> to vector<1x8xf32>
    %73 = vector.broadcast %72 : vector<1x8xf32> to vector<16x8xf32>
    %74 = arith.addf %71, %73 : vector<16x8xf32>
    %75 = vector.shape_cast %62 : vector<16x8xf32> to vector<2x8x8xf32>
    %76 = vector.shape_cast %68 : vector<16x8xf32> to vector<2x8x8xf32>
    %77 = vector.shape_cast %74 : vector<16x8xf32> to vector<2x8x8xf32>
    "tpu.trace_start"() <{level = 10 : i32, message = "bqd,bkd->bqk"}> : () -> ()
    %cst_52 = arith.constant dense<0.000000e+00> : vector<2x8x8xf32>
    %78 = tpu.matmul %75, %76, %cst_52 {dimension_numbers = #tpu.dot_dimension_numbers<[2], [2], [1], [1], [0, 0, 0, 1, 1, 1], [0], [0]>} : vector<2x8x8xf32>, vector<2x8x8xf32>, vector<2x8x8xf32> -> vector<2x8x8xf32>
    "tpu.trace_stop"() : () -> ()
    %cst_53 = arith.constant 0.353553385 : f32
    %79 = vector.broadcast %cst_53 : f32 to vector<2x8x8xf32>
    %80 = arith.mulf %78, %79 : vector<2x8x8xf32>
    %cst_54 = arith.constant dense<0xFF800000> : vector<2x8xf32>
    %81 = vector.multi_reduction <maximumf>, %80, %cst_54 [2] : vector<2x8x8xf32> to vector<2x8xf32>
    %82 = vector.shape_cast %81 : vector<2x8xf32> to vector<2x8x1xf32>
    %83 = vector.broadcast %82 : vector<2x8x1xf32> to vector<2x8x8xf32>
    %84 = arith.subf %80, %83 : vector<2x8x8xf32>
    %85 = math.exp %84 : vector<2x8x8xf32>
    %cst_55 = arith.constant dense<0.000000e+00> : vector<2x8xf32>
    %86 = vector.multi_reduction <add>, %85, %cst_55 [2] : vector<2x8x8xf32> to vector<2x8xf32>
    %87 = vector.shape_cast %86 : vector<2x8xf32> to vector<2x8x1xf32>
    %88 = tpu.reciprocal %87 : vector<2x8x1xf32> -> vector<2x8x1xf32>
    %89 = vector.broadcast %88 : vector<2x8x1xf32> to vector<2x8x8xf32>
    %90 = arith.mulf %85, %89 : vector<2x8x8xf32>
    "tpu.trace_start"() <{level = 10 : i32, message = "bqk,bkd->bqd"}> : () -> ()
    %cst_56 = arith.constant dense<0.000000e+00> : vector<2x8x8xf32>
    %91 = tpu.matmul %90, %77, %cst_56 {dimension_numbers = #tpu.dot_dimension_numbers<[2], [1], [1], [2], [0, 0, 0, 1, 1, 2], [0], [0]>} : vector<2x8x8xf32>, vector<2x8x8xf32>, vector<2x8x8xf32> -> vector<2x8x8xf32>
    "tpu.trace_stop"() : () -> ()
    %92 = vector.shape_cast %91 : vector<2x8x8xf32> to vector<16x8xf32>
    %c0_57 = arith.constant 0 : index
    %c1_58 = arith.constant 1 : index
    %c0_59 = arith.constant 0 : index
    %c0_60 = arith.constant 0 : index
    %93 = vector.load %arg4[%c0_57, %c1_58, %c0_59, %c0_60] : memref<1x4x8x32xf32, #tpu.memory_space<vmem>>, vector<1x1x8x32xf32>
    %94 = vector.shape_cast %93 : vector<1x1x8x32xf32> to vector<8x32xf32>
    %cst_61 = arith.constant dense<0.000000e+00> : vector<16x32xf32>
    %95 = tpu.matmul %92, %94, %cst_61 {dimension_numbers = #tpu.dot_dimension_numbers<[1], [0], [0], [1], [0, 0, 1, 1], [], []>} : vector<16x8xf32>, vector<8x32xf32>, vector<16x32xf32> -> vector<16x32xf32>
    %96 = arith.addf %56, %95 : vector<16x32xf32>
    %c0_62 = arith.constant 0 : index
    %c0_63 = arith.constant 0 : index
    %c2_64 = arith.constant 2 : index
    %c0_65 = arith.constant 0 : index
    %c0_66 = arith.constant 0 : index
    %97 = vector.load %arg3[%c0_62, %c0_63, %c2_64, %c0_65, %c0_66] : memref<1x3x4x32x8xf32, #tpu.memory_space<vmem>>, vector<1x1x1x32x8xf32>
    %98 = vector.shape_cast %97 : vector<1x1x1x32x8xf32> to vector<32x8xf32>
    %cst_67 = arith.constant dense<0.000000e+00> : vector<16x8xf32>
    %99 = tpu.matmul %4, %98, %cst_67 {dimension_numbers = #tpu.dot_dimension_numbers<[1], [0], [0], [1], [0, 0, 1, 1], [], []>} : vector<16x32xf32>, vector<32x8xf32>, vector<16x8xf32> -> vector<16x8xf32>
    %100 = vector.extract_strided_slice %7 {offsets = [0, 16], sizes = [1, 8], strides = [1, 1]} : vector<1x32xf32> to vector<1x8xf32>
    %101 = vector.broadcast %100 : vector<1x8xf32> to vector<16x8xf32>
    %102 = arith.addf %99, %101 : vector<16x8xf32>
    %c0_68 = arith.constant 0 : index
    %c1_69 = arith.constant 1 : index
    %c2_70 = arith.constant 2 : index
    %c0_71 = arith.constant 0 : index
    %c0_72 = arith.constant 0 : index
    %103 = vector.load %arg3[%c0_68, %c1_69, %c2_70, %c0_71, %c0_72] : memref<1x3x4x32x8xf32, #tpu.memory_space<vmem>>, vector<1x1x1x32x8xf32>
    %104 = vector.shape_cast %103 : vector<1x1x1x32x8xf32> to vector<32x8xf32>
    %cst_73 = arith.constant dense<0.000000e+00> : vector<16x8xf32>
    %105 = tpu.matmul %4, %104, %cst_73 {dimension_numbers = #tpu.dot_dimension_numbers<[1], [0], [0], [1], [0, 0, 1, 1], [], []>} : vector<16x32xf32>, vector<32x8xf32>, vector<16x8xf32> -> vector<16x8xf32>
    %106 = vector.extract_strided_slice %8 {offsets = [0, 16], sizes = [1, 8], strides = [1, 1]} : vector<1x32xf32> to vector<1x8xf32>
    %107 = vector.broadcast %106 : vector<1x8xf32> to vector<16x8xf32>
    %108 = arith.addf %105, %107 : vector<16x8xf32>
    %c0_74 = arith.constant 0 : index
    %c2_75 = arith.constant 2 : index
    %c2_76 = arith.constant 2 : index
    %c0_77 = arith.constant 0 : index
    %c0_78 = arith.constant 0 : index
    %109 = vector.load %arg3[%c0_74, %c2_75, %c2_76, %c0_77, %c0_78] : memref<1x3x4x32x8xf32, #tpu.memory_space<vmem>>, vector<1x1x1x32x8xf32>
    %110 = vector.shape_cast %109 : vector<1x1x1x32x8xf32> to vector<32x8xf32>
    %cst_79 = arith.constant dense<0.000000e+00> : vector<16x8xf32>
    %111 = tpu.matmul %4, %110, %cst_79 {dimension_numbers = #tpu.dot_dimension_numbers<[1], [0], [0], [1], [0, 0, 1, 1], [], []>} : vector<16x32xf32>, vector<32x8xf32>, vector<16x8xf32> -> vector<16x8xf32>
    %112 = vector.extract_strided_slice %9 {offsets = [0, 16], sizes = [1, 8], strides = [1, 1]} : vector<1x32xf32> to vector<1x8xf32>
    %113 = vector.broadcast %112 : vector<1x8xf32> to vector<16x8xf32>
    %114 = arith.addf %111, %113 : vector<16x8xf32>
    %115 = vector.shape_cast %102 : vector<16x8xf32> to vector<2x8x8xf32>
    %116 = vector.shape_cast %108 : vector<16x8xf32> to vector<2x8x8xf32>
    %117 = vector.shape_cast %114 : vector<16x8xf32> to vector<2x8x8xf32>
    "tpu.trace_start"() <{level = 10 : i32, message = "bqd,bkd->bqk"}> : () -> ()
    %cst_80 = arith.constant dense<0.000000e+00> : vector<2x8x8xf32>
    %118 = tpu.matmul %115, %116, %cst_80 {dimension_numbers = #tpu.dot_dimension_numbers<[2], [2], [1], [1], [0, 0, 0, 1, 1, 1], [0], [0]>} : vector<2x8x8xf32>, vector<2x8x8xf32>, vector<2x8x8xf32> -> vector<2x8x8xf32>
    "tpu.trace_stop"() : () -> ()
    %cst_81 = arith.constant 0.353553385 : f32
    %119 = vector.broadcast %cst_81 : f32 to vector<2x8x8xf32>
    %120 = arith.mulf %118, %119 : vector<2x8x8xf32>
    %cst_82 = arith.constant dense<0xFF800000> : vector<2x8xf32>
    %121 = vector.multi_reduction <maximumf>, %120, %cst_82 [2] : vector<2x8x8xf32> to vector<2x8xf32>
    %122 = vector.shape_cast %121 : vector<2x8xf32> to vector<2x8x1xf32>
    %123 = vector.broadcast %122 : vector<2x8x1xf32> to vector<2x8x8xf32>
    %124 = arith.subf %120, %123 : vector<2x8x8xf32>
    %125 = math.exp %124 : vector<2x8x8xf32>
    %cst_83 = arith.constant dense<0.000000e+00> : vector<2x8xf32>
    %126 = vector.multi_reduction <add>, %125, %cst_83 [2] : vector<2x8x8xf32> to vector<2x8xf32>
    %127 = vector.shape_cast %126 : vector<2x8xf32> to vector<2x8x1xf32>
    %128 = tpu.reciprocal %127 : vector<2x8x1xf32> -> vector<2x8x1xf32>
    %129 = vector.broadcast %128 : vector<2x8x1xf32> to vector<2x8x8xf32>
    %130 = arith.mulf %125, %129 : vector<2x8x8xf32>
    "tpu.trace_start"() <{level = 10 : i32, message = "bqk,bkd->bqd"}> : () -> ()
    %cst_84 = arith.constant dense<0.000000e+00> : vector<2x8x8xf32>
    %131 = tpu.matmul %130, %117, %cst_84 {dimension_numbers = #tpu.dot_dimension_numbers<[2], [1], [1], [2], [0, 0, 0, 1, 1, 2], [0], [0]>} : vector<2x8x8xf32>, vector<2x8x8xf32>, vector<2x8x8xf32> -> vector<2x8x8xf32>
    "tpu.trace_stop"() : () -> ()
    %132 = vector.shape_cast %131 : vector<2x8x8xf32> to vector<16x8xf32>
    %c0_85 = arith.constant 0 : index
    %c2_86 = arith.constant 2 : index
    %c0_87 = arith.constant 0 : index
    %c0_88 = arith.constant 0 : index
    %133 = vector.load %arg4[%c0_85, %c2_86, %c0_87, %c0_88] : memref<1x4x8x32xf32, #tpu.memory_space<vmem>>, vector<1x1x8x32xf32>
    %134 = vector.shape_cast %133 : vector<1x1x8x32xf32> to vector<8x32xf32>
    %cst_89 = arith.constant dense<0.000000e+00> : vector<16x32xf32>
    %135 = tpu.matmul %132, %134, %cst_89 {dimension_numbers = #tpu.dot_dimension_numbers<[1], [0], [0], [1], [0, 0, 1, 1], [], []>} : vector<16x8xf32>, vector<8x32xf32>, vector<16x32xf32> -> vector<16x32xf32>
    %136 = arith.addf %96, %135 : vector<16x32xf32>
    %c0_90 = arith.constant 0 : index
    %c0_91 = arith.constant 0 : index
    %c3 = arith.constant 3 : index
    %c0_92 = arith.constant 0 : index
    %c0_93 = arith.constant 0 : index
    %137 = vector.load %arg3[%c0_90, %c0_91, %c3, %c0_92, %c0_93] : memref<1x3x4x32x8xf32, #tpu.memory_space<vmem>>, vector<1x1x1x32x8xf32>
    %138 = vector.shape_cast %137 : vector<1x1x1x32x8xf32> to vector<32x8xf32>
    %cst_94 = arith.constant dense<0.000000e+00> : vector<16x8xf32>
    %139 = tpu.matmul %4, %138, %cst_94 {dimension_numbers = #tpu.dot_dimension_numbers<[1], [0], [0], [1], [0, 0, 1, 1], [], []>} : vector<16x32xf32>, vector<32x8xf32>, vector<16x8xf32> -> vector<16x8xf32>
    %140 = vector.extract_strided_slice %7 {offsets = [0, 24], sizes = [1, 8], strides = [1, 1]} : vector<1x32xf32> to vector<1x8xf32>
    %141 = vector.broadcast %140 : vector<1x8xf32> to vector<16x8xf32>
    %142 = arith.addf %139, %141 : vector<16x8xf32>
    %c0_95 = arith.constant 0 : index
    %c1_96 = arith.constant 1 : index
    %c3_97 = arith.constant 3 : index
    %c0_98 = arith.constant 0 : index
    %c0_99 = arith.constant 0 : index
    %143 = vector.load %arg3[%c0_95, %c1_96, %c3_97, %c0_98, %c0_99] : memref<1x3x4x32x8xf32, #tpu.memory_space<vmem>>, vector<1x1x1x32x8xf32>
    %144 = vector.shape_cast %143 : vector<1x1x1x32x8xf32> to vector<32x8xf32>
    %cst_100 = arith.constant dense<0.000000e+00> : vector<16x8xf32>
    %145 = tpu.matmul %4, %144, %cst_100 {dimension_numbers = #tpu.dot_dimension_numbers<[1], [0], [0], [1], [0, 0, 1, 1], [], []>} : vector<16x32xf32>, vector<32x8xf32>, vector<16x8xf32> -> vector<16x8xf32>
    %146 = vector.extract_strided_slice %8 {offsets = [0, 24], sizes = [1, 8], strides = [1, 1]} : vector<1x32xf32> to vector<1x8xf32>
    %147 = vector.broadcast %146 : vector<1x8xf32> to vector<16x8xf32>
    %148 = arith.addf %145, %147 : vector<16x8xf32>
    %c0_101 = arith.constant 0 : index
    %c2_102 = arith.constant 2 : index
    %c3_103 = arith.constant 3 : index
    %c0_104 = arith.constant 0 : index
    %c0_105 = arith.constant 0 : index
    %149 = vector.load %arg3[%c0_101, %c2_102, %c3_103, %c0_104, %c0_105] : memref<1x3x4x32x8xf32, #tpu.memory_space<vmem>>, vector<1x1x1x32x8xf32>
    %150 = vector.shape_cast %149 : vector<1x1x1x32x8xf32> to vector<32x8xf32>
    %cst_106 = arith.constant dense<0.000000e+00> : vector<16x8xf32>
    %151 = tpu.matmul %4, %150, %cst_106 {dimension_numbers = #tpu.dot_dimension_numbers<[1], [0], [0], [1], [0, 0, 1, 1], [], []>} : vector<16x32xf32>, vector<32x8xf32>, vector<16x8xf32> -> vector<16x8xf32>
    %152 = vector.extract_strided_slice %9 {offsets = [0, 24], sizes = [1, 8], strides = [1, 1]} : vector<1x32xf32> to vector<1x8xf32>
    %153 = vector.broadcast %152 : vector<1x8xf32> to vector<16x8xf32>
    %154 = arith.addf %151, %153 : vector<16x8xf32>
    %155 = vector.shape_cast %142 : vector<16x8xf32> to vector<2x8x8xf32>
    %156 = vector.shape_cast %148 : vector<16x8xf32> to vector<2x8x8xf32>
    %157 = vector.shape_cast %154 : vector<16x8xf32> to vector<2x8x8xf32>
    "tpu.trace_start"() <{level = 10 : i32, message = "bqd,bkd->bqk"}> : () -> ()
    %cst_107 = arith.constant dense<0.000000e+00> : vector<2x8x8xf32>
    %158 = tpu.matmul %155, %156, %cst_107 {dimension_numbers = #tpu.dot_dimension_numbers<[2], [2], [1], [1], [0, 0, 0, 1, 1, 1], [0], [0]>} : vector<2x8x8xf32>, vector<2x8x8xf32>, vector<2x8x8xf32> -> vector<2x8x8xf32>
    "tpu.trace_stop"() : () -> ()
    %cst_108 = arith.constant 0.353553385 : f32
    %159 = vector.broadcast %cst_108 : f32 to vector<2x8x8xf32>
    %160 = arith.mulf %158, %159 : vector<2x8x8xf32>
    %cst_109 = arith.constant dense<0xFF800000> : vector<2x8xf32>
    %161 = vector.multi_reduction <maximumf>, %160, %cst_109 [2] : vector<2x8x8xf32> to vector<2x8xf32>
    %162 = vector.shape_cast %161 : vector<2x8xf32> to vector<2x8x1xf32>
    %163 = vector.broadcast %162 : vector<2x8x1xf32> to vector<2x8x8xf32>
    %164 = arith.subf %160, %163 : vector<2x8x8xf32>
    %165 = math.exp %164 : vector<2x8x8xf32>
    %cst_110 = arith.constant dense<0.000000e+00> : vector<2x8xf32>
    %166 = vector.multi_reduction <add>, %165, %cst_110 [2] : vector<2x8x8xf32> to vector<2x8xf32>
    %167 = vector.shape_cast %166 : vector<2x8xf32> to vector<2x8x1xf32>
    %168 = tpu.reciprocal %167 : vector<2x8x1xf32> -> vector<2x8x1xf32>
    %169 = vector.broadcast %168 : vector<2x8x1xf32> to vector<2x8x8xf32>
    %170 = arith.mulf %165, %169 : vector<2x8x8xf32>
    "tpu.trace_start"() <{level = 10 : i32, message = "bqk,bkd->bqd"}> : () -> ()
    %cst_111 = arith.constant dense<0.000000e+00> : vector<2x8x8xf32>
    %171 = tpu.matmul %170, %157, %cst_111 {dimension_numbers = #tpu.dot_dimension_numbers<[2], [1], [1], [2], [0, 0, 0, 1, 1, 2], [0], [0]>} : vector<2x8x8xf32>, vector<2x8x8xf32>, vector<2x8x8xf32> -> vector<2x8x8xf32>
    "tpu.trace_stop"() : () -> ()
    %172 = vector.shape_cast %171 : vector<2x8x8xf32> to vector<16x8xf32>
    %c0_112 = arith.constant 0 : index
    %c3_113 = arith.constant 3 : index
    %c0_114 = arith.constant 0 : index
    %c0_115 = arith.constant 0 : index
    %173 = vector.load %arg4[%c0_112, %c3_113, %c0_114, %c0_115] : memref<1x4x8x32xf32, #tpu.memory_space<vmem>>, vector<1x1x8x32xf32>
    %174 = vector.shape_cast %173 : vector<1x1x8x32xf32> to vector<8x32xf32>
    %cst_116 = arith.constant dense<0.000000e+00> : vector<16x32xf32>
    %175 = tpu.matmul %172, %174, %cst_116 {dimension_numbers = #tpu.dot_dimension_numbers<[1], [0], [0], [1], [0, 0, 1, 1], [], []>} : vector<16x8xf32>, vector<8x32xf32>, vector<16x32xf32> -> vector<16x32xf32>
    %176 = arith.addf %136, %175 : vector<16x32xf32>
    %177 = vector.broadcast %10 : vector<1x32xf32> to vector<16x32xf32>
    %178 = arith.addf %176, %177 : vector<16x32xf32>
    %179 = arith.addf %4, %178 : vector<16x32xf32>
    %cst_117 = arith.constant dense<0.000000e+00> : vector<16xf32>
    %180 = vector.multi_reduction <add>, %179, %cst_117 [1] : vector<16x32xf32> to vector<16xf32>
    %181 = vector.shape_cast %180 : vector<16xf32> to vector<16x1xf32>
    %cst_118 = arith.constant 3.200000e+01 : f32
    %182 = vector.broadcast %cst_118 : f32 to vector<16x1xf32>
    %183 = arith.divf %181, %182 : vector<16x1xf32>
    %184 = vector.broadcast %183 : vector<16x1xf32> to vector<16x32xf32>
    %185 = arith.subf %179, %184 : vector<16x32xf32>
    %186 = arith.mulf %185, %185 : vector<16x32xf32>
    %cst_119 = arith.constant dense<0.000000e+00> : vector<16xf32>
    %187 = vector.multi_reduction <add>, %186, %cst_119 [1] : vector<16x32xf32> to vector<16xf32>
    %188 = vector.shape_cast %187 : vector<16xf32> to vector<16x1xf32>
    %cst_120 = arith.constant 3.200000e+01 : f32
    %189 = vector.broadcast %cst_120 : f32 to vector<16x1xf32>
    %190 = arith.divf %188, %189 : vector<16x1xf32>
    %191 = vector.broadcast %183 : vector<16x1xf32> to vector<16x32xf32>
    %192 = arith.subf %179, %191 : vector<16x32xf32>
    %cst_121 = arith.constant 9.99999974E-6 : f32
    %193 = vector.broadcast %cst_121 : f32 to vector<16x1xf32>
    %194 = arith.addf %190, %193 : vector<16x1xf32>
    %195 = math.rsqrt %194 : vector<16x1xf32>
    %196 = vector.broadcast %195 : vector<16x1xf32> to vector<16x32xf32>
    %197 = arith.mulf %192, %196 : vector<16x32xf32>
    %198 = vector.broadcast %11 : vector<1x32xf32> to vector<16x32xf32>
    %199 = arith.mulf %197, %198 : vector<16x32xf32>
    %200 = vector.broadcast %12 : vector<1x32xf32> to vector<16x32xf32>
    %201 = arith.addf %199, %200 : vector<16x32xf32>
    %c0_122 = arith.constant 0 : index
    %c0_123 = arith.constant 0 : index
    %c0_124 = arith.constant 0 : index
    %202 = vector.load %arg5[%c0_122, %c0_123, %c0_124] : memref<1x32x32xf32, #tpu.memory_space<vmem>>, vector<1x32x32xf32>
    %203 = vector.shape_cast %202 : vector<1x32x32xf32> to vector<32x32xf32>
    %cst_125 = arith.constant dense<0.000000e+00> : vector<16x32xf32>
    %204 = tpu.matmul %201, %203, %cst_125 {dimension_numbers = #tpu.dot_dimension_numbers<[1], [0], [0], [1], [0, 0, 1, 1], [], []>} : vector<16x32xf32>, vector<32x32xf32>, vector<16x32xf32> -> vector<16x32xf32>
    %205 = vector.broadcast %17 : vector<1x32xf32> to vector<16x32xf32>
    %206 = arith.addf %204, %205 : vector<16x32xf32>
    %cst_126 = arith.constant 0.000000e+00 : f32
    %207 = vector.broadcast %cst_126 : f32 to vector<16x32xf32>
    %208 = arith.maximumf %206, %207 : vector<16x32xf32>
    %c0_127 = arith.constant 0 : index
    %c0_128 = arith.constant 0 : index
    %c0_129 = arith.constant 0 : index
    %209 = vector.load %arg6[%c0_127, %c0_128, %c0_129] : memref<1x32x32xf32, #tpu.memory_space<vmem>>, vector<1x32x32xf32>
    %210 = vector.shape_cast %209 : vector<1x32x32xf32> to vector<32x32xf32>
    %cst_130 = arith.constant dense<0.000000e+00> : vector<16x32xf32>
    %211 = tpu.matmul %208, %210, %cst_130 {dimension_numbers = #tpu.dot_dimension_numbers<[1], [0], [0], [1], [0, 0, 1, 1], [], []>} : vector<16x32xf32>, vector<32x32xf32>, vector<16x32xf32> -> vector<16x32xf32>
    %212 = vector.broadcast %13 : vector<1x32xf32> to vector<16x32xf32>
    %213 = arith.addf %211, %212 : vector<16x32xf32>
    %214 = arith.addf %201, %213 : vector<16x32xf32>
    %cst_131 = arith.constant dense<0.000000e+00> : vector<16xf32>
    %215 = vector.multi_reduction <add>, %214, %cst_131 [1] : vector<16x32xf32> to vector<16xf32>
    %216 = vector.shape_cast %215 : vector<16xf32> to vector<16x1xf32>
    %cst_132 = arith.constant 3.200000e+01 : f32
    %217 = vector.broadcast %cst_132 : f32 to vector<16x1xf32>
    %218 = arith.divf %216, %217 : vector<16x1xf32>
    %219 = vector.broadcast %218 : vector<16x1xf32> to vector<16x32xf32>
    %220 = arith.subf %214, %219 : vector<16x32xf32>
    %221 = arith.mulf %220, %220 : vector<16x32xf32>
    %cst_133 = arith.constant dense<0.000000e+00> : vector<16xf32>
    %222 = vector.multi_reduction <add>, %221, %cst_133 [1] : vector<16x32xf32> to vector<16xf32>
    %223 = vector.shape_cast %222 : vector<16xf32> to vector<16x1xf32>
    %cst_134 = arith.constant 3.200000e+01 : f32
    %224 = vector.broadcast %cst_134 : f32 to vector<16x1xf32>
    %225 = arith.divf %223, %224 : vector<16x1xf32>
    %226 = vector.broadcast %218 : vector<16x1xf32> to vector<16x32xf32>
    %227 = arith.subf %214, %226 : vector<16x32xf32>
    %cst_135 = arith.constant 9.99999974E-6 : f32
    %228 = vector.broadcast %cst_135 : f32 to vector<16x1xf32>
    %229 = arith.addf %225, %228 : vector<16x1xf32>
    %230 = math.rsqrt %229 : vector<16x1xf32>
    %231 = vector.broadcast %230 : vector<16x1xf32> to vector<16x32xf32>
    %232 = arith.mulf %227, %231 : vector<16x32xf32>
    %233 = vector.broadcast %14 : vector<1x32xf32> to vector<16x32xf32>
    %234 = arith.mulf %232, %233 : vector<16x32xf32>
    %235 = vector.broadcast %15 : vector<1x32xf32> to vector<16x32xf32>
    %236 = arith.addf %234, %235 : vector<16x32xf32>
    %237 = vector.shape_cast %236 : vector<16x32xf32> to vector<2x8x32xf32>
    %c0_136 = arith.constant 0 : index
    %c0_137 = arith.constant 0 : index
    %c0_138 = arith.constant 0 : index
    %238 = vector.load %arg10[%c0_136, %c0_137, %c0_138] : memref<2x8x32xf32, #tpu.memory_space<vmem>>, vector<2x8x32xf32>
    tpu.vector_store %arg10[%c0_136, %c0_137, %c0_138], %237 {strides = array<i32>} : memref<2x8x32xf32, #tpu.memory_space<vmem>>, vector<2x8x32xf32>,
    %c1_i32 = arith.constant 1 : i32
    %239 = arith.cmpi eq, %arg1, %c1_i32 : i32
    %240 = arith.extui %239 : i1 to i32
    %c0_i32_139 = arith.constant 0 : i32
    %241 = arith.cmpi ne, %240, %c0_i32_139 : i32
    scf.if %241 {
      %c0_140 = arith.constant 0 : index
      %c0_141 = arith.constant 0 : index
      %c0_142 = arith.constant 0 : index
      %242 = vector.load %arg10[%c0_140, %c0_141, %c0_142] : memref<2x8x32xf32, #tpu.memory_space<vmem>>, vector<2x8x32xf32>
      %c0_143 = arith.constant 0 : index
      %c0_144 = arith.constant 0 : index
      %c0_145 = arith.constant 0 : index
      %243 = vector.load %arg9[%c0_143, %c0_144, %c0_145] : memref<2x8x32xf32, #tpu.memory_space<vmem>>, vector<2x8x32xf32>
      tpu.vector_store %arg9[%c0_143, %c0_144, %c0_145], %242 {strides = array<i32>} : memref<2x8x32xf32, #tpu.memory_space<vmem>>, vector<2x8x32xf32>,
    } else {
    }
    return
  }
  func.func @transform_0(%arg0: i32, %arg1: i32) -> (i32, i32, i32) {
    %c0_i32 = arith.constant 0 : i32
    %c0_i32_0 = arith.constant 0 : i32
    %c0_i32_1 = arith.constant 0 : i32
    return %arg0, %c0_i32, %c0_i32_0 : i32, i32, i32
  }
  func.func @transform_1(%arg0: i32, %arg1: i32) -> (i32, i32, i32, i32, i32) {
    %c0_i32 = arith.constant 0 : i32
    %c0_i32_0 = arith.constant 0 : i32
    %c0_i32_1 = arith.constant 0 : i32
    %c0_i32_2 = arith.constant 0 : i32
    %c0_i32_3 = arith.constant 0 : i32
    return %arg1, %c0_i32, %c0_i32_0, %c0_i32_1, %c0_i32_2 : i32, i32, i32, i32, i32
  }
  func.func @transform_2(%arg0: i32, %arg1: i32) -> (i32, i32, i32, i32) {
    %c0_i32 = arith.constant 0 : i32
    %c0_i32_0 = arith.constant 0 : i32
    %c0_i32_1 = arith.constant 0 : i32
    %c0_i32_2 = arith.constant 0 : i32
    return %arg1, %c0_i32, %c0_i32_0, %c0_i32_1 : i32, i32, i32, i32
  }
  func.func @transform_3(%arg0: i32, %arg1: i32) -> (i32, i32, i32) {
    %c0_i32 = arith.constant 0 : i32
    %c0_i32_0 = arith.constant 0 : i32
    %c0_i32_1 = arith.constant 0 : i32
    return %arg1, %c0_i32, %c0_i32_0 : i32, i32, i32
  }
  func.func @transform_4(%arg0: i32, %arg1: i32) -> (i32, i32, i32) {
    %c0_i32 = arith.constant 0 : i32
    %c0_i32_0 = arith.constant 0 : i32
    %c0_i32_1 = arith.constant 0 : i32
    return %arg1, %c0_i32, %c0_i32_0 : i32, i32, i32
  }
  func.func @transform_5(%arg0: i32, %arg1: i32) -> (i32, i32, i32) {
    %c0_i32 = arith.constant 0 : i32
    %c0_i32_0 = arith.constant 0 : i32
    %c0_i32_1 = arith.constant 0 : i32
    return %arg1, %c0_i32, %c0_i32_0 : i32, i32, i32
  }
  func.func @transform_6(%arg0: i32, %arg1: i32) -> (i32, i32, i32) {
    %c0_i32 = arith.constant 0 : i32
    %c0_i32_0 = arith.constant 0 : i32
    %c0_i32_1 = arith.constant 0 : i32
    return %arg1, %c0_i32, %c0_i32_0 : i32, i32, i32
  }
  func.func @transform_7(%arg0: i32, %arg1: i32) -> (i32, i32, i32) {
    %c0_i32 = arith.constant 0 : i32
    %c0_i32_0 = arith.constant 0 : i32
    %c0_i32_1 = arith.constant 0 : i32
    return %arg0, %c0_i32, %c0_i32_0 : i32, i32, i32
  }
}

</mosaic_0001>

<llo_original>
// kernel: tpu_custom_call.1
$region0: #{tpu_custom_call.1}
  #allocation0 [shape = 'u32[]', space=smem, size = 0x4, offset = 0x4, fixed_abs, tag = 'smem constant byte address 0x4 - core index']
  #allocation1 [shape = 'u32[72,128]{1,0:T(1,128)}', space=vmem, size = 0x9000, scoped, tag = 'internal scratch']
  #allocation2 [shape = 'f32[2,8,32]{2,1,0:T(8,128)}', space=vmem, size = 0x2000, scoped, tag = 'scratch operand']
  %s0 = inlined_call_operand.vmem [shape: f32[2,8,32], index: 0, kind: input, shape index: {}]
  %s1 = inlined_call_operand.vmem [shape: f32[2,3,4,32,8], index: 1, kind: input, shape index: {}]
  %s2 = inlined_call_operand.vmem [shape: f32[2,4,8,32], index: 2, kind: input, shape index: {}]
  %s3 = inlined_call_operand.vmem [shape: f32[2,32,32], index: 3, kind: input, shape index: {}]
  %s4 = inlined_call_operand.vmem [shape: f32[2,32,32], index: 4, kind: input, shape index: {}]
  %s5 = inlined_call_operand.vmem [shape: f32[2,9,32], index: 5, kind: input, shape index: {}]
  %s6 = inlined_call_operand.vmem [shape: f32[2,1,32], index: 6, kind: input, shape index: {}]
  %s7 = inlined_call_operand.hbm [shape: f32[2,8,32], index: 7, kind: output, shape index: {}]
  %s8 = sld [smem:[#allocation0]]
  $region69: #{tpu_custom_call.1} parent=0
    _
  %s10 = ssub.s32 1, %s8
  %s11 = scalar_select 0, %s10, %s8
  $region1: #{tpu_custom_call.1} parent=0
    #allocation3 [shape = 'u8[8192]{0}', space=vmem, size = 0x2000, scoped, tag = 'output window, operand 0, single buffered']
    #allocation4 [shape = 's32[2]{0}', space=sflag, size = 0x8, scoped, tag = 'scoped memory for tpu_custom_call.1']
    %12 = vsyncpa [#allocation4], 0
    loop: start=0, step=1, limit=4
    $region2: #{tpu_custom_call.1} parent=1 // loop_pre_header
      _
    $region3: #{tpu_custom_call.1} parent=1 // loop_header
      %s14 = sphi 0, %s18
      %p15 = scmp.ge.s32.totalorder %s14, 4
      %s21 = sphi 0, %s33
      %s22 = sphi 0, %s29
      %s23 = sphi 0, %s21
      %s24 = sphi 0, %s22
      %s25 = sphi 0, %s23
      %s26 = sphi 0, %s24
      %s36 = sphi 0, %s38
      %s39 = sphi 0, %s36
      %s40 = sphi 0, %s39
      %s56 = sphi 0, %s40
      %s62 = sphi 0, %s64
      %s65 = sphi 0, %s62
      %s66 = sphi 0, %s65
      %s82 = sphi 0, %s66
      %s88 = sphi 0, %s90
      %s91 = sphi 0, %s88
      %s92 = sphi 0, %s91
      %s108 = sphi 0, %s92
      %s114 = sphi 0, %s116
      %s117 = sphi 0, %s114
      %s118 = sphi 0, %s117
      %s134 = sphi 0, %s118
      %s140 = sphi 0, %s142
      %s143 = sphi 0, %s140
      %s144 = sphi 0, %s143
      %s160 = sphi 0, %s144
      %s166 = sphi 0, %s168
      %s169 = sphi 0, %s166
      %s170 = sphi 0, %s169
      %s186 = sphi 0, %s170
      %s192 = sphi 0, %s194
      %s195 = sphi 0, %s192
      %s196 = sphi 0, %s195
      %s212 = sphi 0, %s196
      %s218 = sphi 0, %s220
      %s221 = sphi 0, %s218
      %s222 = sphi 0, %s221
      %s238 = sphi 0, %s222
    $region4: #{tpu_custom_call.1} parent=1 // loop_header_branch
      %17 = sbr.rel (%p15) target = $region8
    $region5: #{tpu_custom_call.1} parent=1 // loop_body
      %s19 = ssub.s32 %s14, 1
      %s20 = ssub.s32 %s14, 2
      %s27 = sadd.s32 1, %s22
      %p28 = scmp.ge.s32.totalorder %s27, 2
      %s29 = scalar_select %p28, 0, %s27
      %s30 = sadd.s32 1, %s21
      %s31 = scalar_select %p28, %s30, %s21
      %p32 = scmp.ge.s32.totalorder %s31, 1
      %s33 = scalar_select %p32, 0, %s31
      %s34 = ssub.s32 %s21, %s33
      %p35 = scmp.eq.s32.totalorder %s34, 0
      %s37 = sadd.s32 %s36, 1
      %s38 = scalar_select %p35, %s36, %s37
      %p41 = pneg %p35
      %p42 = scmp.eq.s32.totalorder %s14, 1
      %p43 = por %p41, %p42
      %p44 = scmp.ne.s32.totalorder %s36, %s39
      %p45 = scmp.eq.s32.totalorder %s14, 0
      %p46 = por %p44, %p45
      %p47 = scmp.ne.s32.totalorder %s36, %s39
      %p48 = scmp.eq.s32.totalorder %s19, 1
      %p49 = por %p47, %p48
      %p50 = scmp.ne.s32.totalorder %s39, %s40
      %p51 = scmp.eq.s32.totalorder %s19, 0
      %p52 = por %p50, %p51
      %p53 = scmp.ne.s32.totalorder %s39, %s40
      %p54 = scmp.eq.s32.totalorder %s20, 1
      %p55 = por %p53, %p54
      %p57 = scmp.ne.s32.totalorder %s40, %s56
      %p58 = scmp.eq.s32.totalorder %s20, 0
      %p59 = por %p57, %p58
      %s60 = ssub.s32 %s22, %s29
      %p61 = scmp.eq.s32.totalorder %s60, 0
      %s63 = sadd.s32 %s62, 1
      %s64 = scalar_select %p61, %s62, %s63
      %p67 = pneg %p61
      %p68 = scmp.eq.s32.totalorder %s14, 1
      %p69 = por %p67, %p68
      %p70 = scmp.ne.s32.totalorder %s62, %s65
      %p71 = scmp.eq.s32.totalorder %s14, 0
      %p72 = por %p70, %p71
      %p73 = scmp.ne.s32.totalorder %s62, %s65
      %p74 = scmp.eq.s32.totalorder %s19, 1
      %p75 = por %p73, %p74
      %p76 = scmp.ne.s32.totalorder %s65, %s66
      %p77 = scmp.eq.s32.totalorder %s19, 0
      %p78 = por %p76, %p77
      %p79 = scmp.ne.s32.totalorder %s65, %s66
      %p80 = scmp.eq.s32.totalorder %s20, 1
      %p81 = por %p79, %p80
      %p83 = scmp.ne.s32.totalorder %s66, %s82
      %p84 = scmp.eq.s32.totalorder %s20, 0
      %p85 = por %p83, %p84
      %s86 = ssub.s32 %s22, %s29
      %p87 = scmp.eq.s32.totalorder %s86, 0
      %s89 = sadd.s32 %s88, 1
      %s90 = scalar_select %p87, %s88, %s89
      %p93 = pneg %p87
      %p94 = scmp.eq.s32.totalorder %s14, 1
      %p95 = por %p93, %p94
      %p96 = scmp.ne.s32.totalorder %s88, %s91
      %p97 = scmp.eq.s32.totalorder %s14, 0
      %p98 = por %p96, %p97
      %p99 = scmp.ne.s32.totalorder %s88, %s91
      %p100 = scmp.eq.s32.totalorder %s19, 1
      %p101 = por %p99, %p100
      %p102 = scmp.ne.s32.totalorder %s91, %s92
      %p103 = scmp.eq.s32.totalorder %s19, 0
      %p104 = por %p102, %p103
      %p105 = scmp.ne.s32.totalorder %s91, %s92
      %p106 = scmp.eq.s32.totalorder %s20, 1
      %p107 = por %p105, %p106
      %p109 = scmp.ne.s32.totalorder %s92, %s108
      %p110 = scmp.eq.s32.totalorder %s20, 0
      %p111 = por %p109, %p110
      %s112 = ssub.s32 %s22, %s29
      %p113 = scmp.eq.s32.totalorder %s112, 0
      %s115 = sadd.s32 %s114, 1
      %s116 = scalar_select %p113, %s114, %s115
      %p119 = pneg %p113
      %p120 = scmp.eq.s32.totalorder %s14, 1
      %p121 = por %p119, %p120
      %p122 = scmp.ne.s32.totalorder %s114, %s117
      %p123 = scmp.eq.s32.totalorder %s14, 0
      %p124 = por %p122, %p123
      %p125 = scmp.ne.s32.totalorder %s114, %s117
      %p126 = scmp.eq.s32.totalorder %s19, 1
      %p127 = por %p125, %p126
      %p128 = scmp.ne.s32.totalorder %s117, %s118
      %p129 = scmp.eq.s32.totalorder %s19, 0
      %p130 = por %p128, %p129
      %p131 = scmp.ne.s32.totalorder %s117, %s118
      %p132 = scmp.eq.s32.totalorder %s20, 1
      %p133 = por %p131, %p132
      %p135 = scmp.ne.s32.totalorder %s118, %s134
      %p136 = scmp.eq.s32.totalorder %s20, 0
      %p137 = por %p135, %p136
      %s138 = ssub.s32 %s22, %s29
      %p139 = scmp.eq.s32.totalorder %s138, 0
      %s141 = sadd.s32 %s140, 1
      %s142 = scalar_select %p139, %s140, %s141
      %p145 = pneg %p139
      %p146 = scmp.eq.s32.totalorder %s14, 1
      %p147 = por %p145, %p146
      %p148 = scmp.ne.s32.totalorder %s140, %s143
      %p149 = scmp.eq.s32.totalorder %s14, 0
      %p150 = por %p148, %p149
      %p151 = scmp.ne.s32.totalorder %s140, %s143
      %p152 = scmp.eq.s32.totalorder %s19, 1
      %p153 = por %p151, %p152
      %p154 = scmp.ne.s32.totalorder %s143, %s144
      %p155 = scmp.eq.s32.totalorder %s19, 0
      %p156 = por %p154, %p155
      %p157 = scmp.ne.s32.totalorder %s143, %s144
      %p158 = scmp.eq.s32.totalorder %s20, 1
      %p159 = por %p157, %p158
      %p161 = scmp.ne.s32.totalorder %s144, %s160
      %p162 = scmp.eq.s32.totalorder %s20, 0
      %p163 = por %p161, %p162
      %s164 = ssub.s32 %s22, %s29
      %p165 = scmp.eq.s32.totalorder %s164, 0
      %s167 = sadd.s32 %s166, 1
      %s168 = scalar_select %p165, %s166, %s167
      %p171 = pneg %p165
      %p172 = scmp.eq.s32.totalorder %s14, 1
      %p173 = por %p171, %p172
      %p174 = scmp.ne.s32.totalorder %s166, %s169
      %p175 = scmp.eq.s32.totalorder %s14, 0
      %p176 = por %p174, %p175
      %p177 = scmp.ne.s32.totalorder %s166, %s169
      %p178 = scmp.eq.s32.totalorder %s19, 1
      %p179 = por %p177, %p178
      %p180 = scmp.ne.s32.totalorder %s169, %s170
      %p181 = scmp.eq.s32.totalorder %s19, 0
      %p182 = por %p180, %p181
      %p183 = scmp.ne.s32.totalorder %s169, %s170
      %p184 = scmp.eq.s32.totalorder %s20, 1
      %p185 = por %p183, %p184
      %p187 = scmp.ne.s32.totalorder %s170, %s186
      %p188 = scmp.eq.s32.totalorder %s20, 0
      %p189 = por %p187, %p188
      %s190 = ssub.s32 %s22, %s29
      %p191 = scmp.eq.s32.totalorder %s190, 0
      %s193 = sadd.s32 %s192, 1
      %s194 = scalar_select %p191, %s192, %s193
      %p197 = pneg %p191
      %p198 = scmp.eq.s32.totalorder %s14, 1
      %p199 = por %p197, %p198
      %p200 = scmp.ne.s32.totalorder %s192, %s195
      %p201 = scmp.eq.s32.totalorder %s14, 0
      %p202 = por %p200, %p201
      %p203 = scmp.ne.s32.totalorder %s192, %s195
      %p204 = scmp.eq.s32.totalorder %s19, 1
      %p205 = por %p203, %p204
      %p206 = scmp.ne.s32.totalorder %s195, %s196
      %p207 = scmp.eq.s32.totalorder %s19, 0
      %p208 = por %p206, %p207
      %p209 = scmp.ne.s32.totalorder %s195, %s196
      %p210 = scmp.eq.s32.totalorder %s20, 1
      %p211 = por %p209, %p210
      %p213 = scmp.ne.s32.totalorder %s196, %s212
      %p214 = scmp.eq.s32.totalorder %s20, 0
      %p215 = por %p213, %p214
      %s216 = ssub.s32 %s21, %s33
      %p217 = scmp.eq.s32.totalorder %s216, 0
      %s219 = sadd.s32 %s218, 1
      %s220 = scalar_select %p217, %s218, %s219
      %p223 = pneg %p217
      %p224 = scmp.eq.s32.totalorder %s14, 1
      %p225 = por %p223, %p224
      %p226 = scmp.ne.s32.totalorder %s218, %s221
      %p227 = scmp.eq.s32.totalorder %s14, 0
      %p228 = por %p226, %p227
      %p229 = scmp.ne.s32.totalorder %s218, %s221
      %p230 = scmp.eq.s32.totalorder %s19, 1
      %p231 = por %p229, %p230
      %p232 = scmp.ne.s32.totalorder %s221, %s222
      %p233 = scmp.eq.s32.totalorder %s19, 0
      %p234 = por %p232, %p233
      %p235 = scmp.ne.s32.totalorder %s221, %s222
      %p236 = scmp.eq.s32.totalorder %s20, 1
      %p237 = por %p235, %p236
      %p239 = scmp.ne.s32.totalorder %s222, %s238
      %p240 = scmp.eq.s32.totalorder %s20, 0
      %p241 = por %p239, %p240
      %p242 = scmp.le.s32.totalorder 1, %s14
      %p243 = scmp.lt.s32.totalorder %s14, 3
      %p244 = pnand %p242, %p243
      %p245 = pneg %p244
      // Predicated region
      $region9: #{tpu_custom_call.1} parent=5 // pred_check
        _
      $region10: #{tpu_custom_call.1} parent=5 // pred_check_branch
        %247 = sbr.rel (%p244) target = $region12
      $region11: #{tpu_custom_call.1} parent=5 // pred_region
        %s248 = ssub.s32 %s14, 1
        // Predicated region
        $region13: #{tpu_custom_call.1} parent=11 // pred_check
          %p249 = pneg %p52
        $region14: #{tpu_custom_call.1} parent=11 // pred_check_branch
          %251 = sbr.rel (%p249) target = $region16
        $region15: #{tpu_custom_call.1} parent=11 // pred_region
          %s252 = smul.u32 2, %s23
          %p253 = scmp.lt.s32.totalorder %s252, 1
          %s254 = scalar_select %p253, %s252, 1
          %s255 = smul.addr %s254, 8
          %s256 = scalar_lea.vmem %s0, %s255
          %s257 = smul.u32 2, %s23
        $region16: #{tpu_custom_call.1} parent=11 // pred_fallthru
          _
      $region12: #{tpu_custom_call.1} parent=5 // pred_fallthru
        _
      %p258 = scmp.lt.s32.totalorder %s14, 2
      // Predicated region
      $region17: #{tpu_custom_call.1} parent=5 // pred_check
        %p259 = pneg %p258
      $region18: #{tpu_custom_call.1} parent=5 // pred_check_branch
        %261 = sbr.rel (%p259) target = $region20
      $region19: #{tpu_custom_call.1} parent=5 // pred_region
        // Predicated region
        $region21: #{tpu_custom_call.1} parent=19 // pred_check
          %p262 = pneg %p72
        $region22: #{tpu_custom_call.1} parent=19 // pred_check_branch
          %264 = sbr.rel (%p262) target = $region24
        $region23: #{tpu_custom_call.1} parent=19 // pred_region
          %p265 = scmp.lt.s32.totalorder %s22, 1
          %s266 = scalar_select %p265, %s22, 1
          %s267 = smul.addr %s266, 48
          %s268 = smul.addr %s267, 8
          %s269 = scalar_lea.vmem %s1, %s268
        $region24: #{tpu_custom_call.1} parent=19 // pred_fallthru
          _
        // Predicated region
        $region25: #{tpu_custom_call.1} parent=19 // pred_check
          %p270 = pneg %p98
        $region26: #{tpu_custom_call.1} parent=19 // pred_check_branch
          %272 = sbr.rel (%p270) target = $region28
        $region27: #{tpu_custom_call.1} parent=19 // pred_region
          %p273 = scmp.lt.s32.totalorder %s22, 1
          %s274 = scalar_select %p273, %s22, 1
          %s275 = smul.addr %s274, 4
          %s276 = smul.addr %s275, 8
          %s277 = scalar_lea.vmem %s2, %s276
        $region28: #{tpu_custom_call.1} parent=19 // pred_fallthru
          _
        // Predicated region
        $region29: #{tpu_custom_call.1} parent=19 // pred_check
          %p278 = pneg %p124
        $region30: #{tpu_custom_call.1} parent=19 // pred_check_branch
          %280 = sbr.rel (%p278) target = $region32
        $region31: #{tpu_custom_call.1} parent=19 // pred_region
          %p281 = scmp.lt.s32.totalorder %s22, 1
          %s282 = scalar_select %p281, %s22, 1
          %s283 = smul.addr %s282, 4
          %s284 = smul.addr %s283, 8
          %s285 = scalar_lea.vmem %s3, %s284
        $region32: #{tpu_custom_call.1} parent=19 // pred_fallthru
          _
        // Predicated region
        $region33: #{tpu_custom_call.1} parent=19 // pred_check
          %p286 = pneg %p150
        $region34: #{tpu_custom_call.1} parent=19 // pred_check_branch
          %288 = sbr.rel (%p286) target = $region36
        $region35: #{tpu_custom_call.1} parent=19 // pred_region
          %p289 = scmp.lt.s32.totalorder %s22, 1
          %s290 = scalar_select %p289, %s22, 1
          %s291 = smul.addr %s290, 4
          %s292 = smul.addr %s291, 8
          %s293 = scalar_lea.vmem %s4, %s292
        $region36: #{tpu_custom_call.1} parent=19 // pred_fallthru
          _
        // Predicated region
        $region37: #{tpu_custom_call.1} parent=19 // pred_check
          %p294 = pneg %p176
        $region38: #{tpu_custom_call.1} parent=19 // pred_check_branch
          %296 = sbr.rel (%p294) target = $region40
        $region39: #{tpu_custom_call.1} parent=19 // pred_region
          %p297 = scmp.lt.s32.totalorder %s22, 1
          %s298 = scalar_select %p297, %s22, 1
          %s299 = smul.addr %s298, 2
          %s300 = smul.addr %s299, 8
          %s301 = scalar_lea.vmem %s5, %s300
        $region40: #{tpu_custom_call.1} parent=19 // pred_fallthru
          _
        // Predicated region
        $region41: #{tpu_custom_call.1} parent=19 // pred_check
          %p302 = pneg %p202
        $region42: #{tpu_custom_call.1} parent=19 // pred_check_branch
          %304 = sbr.rel (%p302) target = $region44
        $region43: #{tpu_custom_call.1} parent=19 // pred_region
          %p305 = scmp.lt.s32.totalorder %s22, 1
          %s306 = scalar_select %p305, %s22, 1
          %s307 = scalar_lea.vmem %s6, %s306
        $region44: #{tpu_custom_call.1} parent=19 // pred_fallthru
          _
      $region20: #{tpu_custom_call.1} parent=5 // pred_fallthru
        _
      %p308 = scmp.le.s32.totalorder 1, %s14
      %p309 = scmp.lt.s32.totalorder %s14, 3
      %p310 = pnand %p308, %p309
      %p311 = pneg %p310
      // Predicated region
      $region45: #{tpu_custom_call.1} parent=5 // pred_check
        _
      $region46: #{tpu_custom_call.1} parent=5 // pred_check_branch
        %313 = sbr.rel (%p310) target = $region48
      $region47: #{tpu_custom_call.1} parent=5 // pred_region
        %s314 = ssub.s32 %s14, 1
        %s315 = smul.u32 2, %s23
        %p316 = scmp.lt.s32.totalorder %s315, 1
        %s317 = scalar_select %p316, %s315, 1
        %s318 = smul.addr %s317, 8
        %s319 = scalar_lea.vmem %s0, %s318
        %p320 = pneg %p52
        %p321 = pneg %p49
        %p322 = scmp.lt.s32.totalorder %s24, 1
        %s323 = scalar_select %p322, %s24, 1
        %s324 = smul.addr %s323, 48
        %s325 = smul.addr %s324, 8
        %s326 = scalar_lea.vmem %s1, %s325
        %p327 = pneg %p78
        %p328 = pneg %p75
        %p329 = scmp.lt.s32.totalorder %s24, 1
        %s330 = scalar_select %p329, %s24, 1
        %s331 = smul.addr %s330, 4
        %s332 = smul.addr %s331, 8
        %s333 = scalar_lea.vmem %s2, %s332
        %p334 = pneg %p104
        %p335 = pneg %p101
        %p336 = scmp.lt.s32.totalorder %s24, 1
        %s337 = scalar_select %p336, %s24, 1
        %s338 = smul.addr %s337, 4
        %s339 = smul.addr %s338, 8
        %s340 = scalar_lea.vmem %s3, %s339
        %p341 = pneg %p130
        %p342 = pneg %p127
        %p343 = scmp.lt.s32.totalorder %s24, 1
        %s344 = scalar_select %p343, %s24, 1
        %s345 = smul.addr %s344, 4
        %s346 = smul.addr %s345, 8
        %s347 = scalar_lea.vmem %s4, %s346
        %p348 = pneg %p156
        %p349 = pneg %p153
        %p350 = scmp.lt.s32.totalorder %s24, 1
        %s351 = scalar_select %p350, %s24, 1
        %s352 = smul.addr %s351, 2
        %s353 = smul.addr %s352, 8
        %s354 = scalar_lea.vmem %s5, %s353
        %p355 = pneg %p182
        %p356 = pneg %p179
        %p357 = scmp.lt.s32.totalorder %s24, 1
        %s358 = scalar_select %p357, %s24, 1
        %s359 = scalar_lea.vmem %s6, %s358
        %p360 = pneg %p208
        %p361 = pneg %p205
        %p362 = pneg %p234
        %p363 = pneg %p231
        %s364 = smul.u32 2, %s23
        %p365 = scmp.lt.s32.totalorder %s364, 1
        %s366 = scalar_select %p365, %s364, 1
        %s367 = smul.addr %s366, 8
        %s368 = scalar_lea.vmem %s0, %s367
        %s369 = smul.u32 2, %s23
        %p370 = scmp.lt.s32.totalorder %s24, 1
        %s371 = scalar_select %p370, %s24, 1
        %s372 = smul.addr %s371, 48
        %s373 = smul.addr %s372, 8
        %s374 = scalar_lea.vmem %s1, %s373
        %p375 = scmp.lt.s32.totalorder %s24, 1
        %s376 = scalar_select %p375, %s24, 1
        %s377 = smul.addr %s376, 4
        %s378 = smul.addr %s377, 8
        %s379 = scalar_lea.vmem %s2, %s378
        %p380 = scmp.lt.s32.totalorder %s24, 1
        %s381 = scalar_select %p380, %s24, 1
        %s382 = smul.addr %s381, 4
        %s383 = smul.addr %s382, 8
        %s384 = scalar_lea.vmem %s3, %s383
        %p385 = scmp.lt.s32.totalorder %s24, 1
        %s386 = scalar_select %p385, %s24, 1
        %s387 = smul.addr %s386, 4
        %s388 = smul.addr %s387, 8
        %s389 = scalar_lea.vmem %s4, %s388
        %p390 = scmp.lt.s32.totalorder %s24, 1
        %s391 = scalar_select %p390, %s24, 1
        %s392 = smul.addr %s391, 2
        %s393 = smul.addr %s392, 8
        %s394 = scalar_lea.vmem %s5, %s393
        %p395 = scmp.lt.s32.totalorder %s24, 1
        %s396 = scalar_select %p395, %s24, 1
        %s397 = scalar_lea.vmem %s6, %s396
        %s398 = smul.u32 2, %s23
        %p399 = scmp.eq.s32.totalorder %s24, 0
        // Predicated region
        $region49: #{tpu_custom_call.1} parent=47 // pred_check
          %p400 = pneg %p399
        $region50: #{tpu_custom_call.1} parent=47 // pred_check_branch
          %402 = sbr.rel (%p400) target = $region52
        $region51: #{tpu_custom_call.1} parent=47 // pred_region
          %v403 = vld [vmem:[%s368] sm:$0xff]
          %v404 = vld [vmem:[%s368 + $0x8] sm:$0xff]
          %vm405 = vcmask 261120
          %406 = vst.msk [vmem:[#allocation2] sm:$0xff] %vm405, %v403
          %407 = vst.msk [vmem:[#allocation2 + $0x8] sm:$0xff] %vm405, %v404
        $region52: #{tpu_custom_call.1} parent=47 // pred_fallthru
          _
        %v408 = vld [vmem:[#allocation2] sm:$0xff]
        %v409 = vld [vmem:[#allocation2 + $0x8] sm:$0xff]
        %v410 = vld [vmem:[%s394] sm:$0xff]
        %v411 = vld [vmem:[%s394 + $0x8] sm:$0x1]
        %v412 = vld [vmem:[%s397] sm:$0x1]
        %v413 = vld [vmem:[%s374] sm:$0xff]
        %v414 = vld [vmem:[%s374 + $0x8] sm:$0xff]
        %v415 = vld [vmem:[%s374 + $0x10] sm:$0xff]
        %v416 = vld [vmem:[%s374 + $0x18] sm:$0xff]
        %v417 = vperm.slane %v410, 0
        %vm418 = vcmask 261120
        %v420 = vsel %vm418, %v408, 0
        %v423 = vsel %vm418, %v409, 0
        %425 = vmatpush.msra.mxu0 0.0
        %426 = vmatpush.msra.mxu0 0.0
        %427 = vmatpush.msra.mxu0 0.0
        %428 = vmatpush.msra.mxu0 0.0
        %429 = vmatpush.msra.mxu0 0.0
        %430 = vmatpush.msra.mxu0 0.0
        %431 = vmatpush.msra.mxu0 0.0
        %432 = vmatpush.msra.mxu0 0.0
        %433 = vmatpush.msra.mxu0 0.0
        %434 = vmatpush.msra.mxu0 0.0
        %435 = vmatpush.msra.mxu0 0.0
        %436 = vmatpush.msra.mxu0 0.0
        %437 = vmatpush.msra.mxu0 %v416
        %438 = vmatpush.msra.mxu0 %v415
        %439 = vmatpush.msra.mxu0 %v414
        %440 = vmatpush.msra.mxu0 %v413
        %441 = vmatmul.f32.gmra.mxu0 %v420
        %v442 = vpop.f32.mrf.mxu0
        %v443 = vadd.f32 %v417, %v442
        %444 = vmatmul.f32.gmra.mxu0 %v423
        %v445 = vpop.f32.mrf.mxu0
        %v446 = vadd.f32 %v417, %v445
        %447 = vdwg.mxu0
        %s448 = scalar_lea.vmem %s374, 128
        %v449 = vld [vmem:[%s448] sm:$0xff]
        %v450 = vld [vmem:[%s448 + $0x8] sm:$0xff]
        %v451 = vld [vmem:[%s448 + $0x10] sm:$0xff]
        %v452 = vld [vmem:[%s448 + $0x18] sm:$0xff]
        %v453 = vperm.slane %v410, 1
        %454 = vmatpush.msra.mxu0 0.0
        %455 = vmatpush.msra.mxu0 0.0
        %456 = vmatpush.msra.mxu0 0.0
        %457 = vmatpush.msra.mxu0 0.0
        %458 = vmatpush.msra.mxu0 0.0
        %459 = vmatpush.msra.mxu0 0.0
        %460 = vmatpush.msra.mxu0 0.0
        %461 = vmatpush.msra.mxu0 0.0
        %462 = vmatpush.msra.mxu0 0.0
        %463 = vmatpush.msra.mxu0 0.0
        %464 = vmatpush.msra.mxu0 0.0
        %465 = vmatpush.msra.mxu0 0.0
        %466 = vmatpush.msra.mxu0 %v452
        %467 = vmatpush.msra.mxu0 %v451
        %468 = vmatpush.msra.mxu0 %v450
        %469 = vmatpush.msra.mxu0 %v449
        %470 = vmatmul.f32.gmra.mxu0 %v420
        %v471 = vpop.f32.mrf.mxu0
        %v472 = vadd.f32 %v453, %v471
        %473 = vmatmul.f32.gmra.mxu0 %v423
        %v474 = vpop.f32.mrf.mxu0
        %v475 = vadd.f32 %v453, %v474
        %476 = vdwg.mxu0
        %s477 = scalar_lea.vmem %s374, 256
        %v478 = vld [vmem:[%s477] sm:$0xff]
        %v479 = vld [vmem:[%s477 + $0x8] sm:$0xff]
        %v480 = vld [vmem:[%s477 + $0x10] sm:$0xff]
        %v481 = vld [vmem:[%s477 + $0x18] sm:$0xff]
        %v482 = vperm.slane %v410, 2
        %483 = vmatpush.msra.mxu0 0.0
        %484 = vmatpush.msra.mxu0 0.0
        %485 = vmatpush.msra.mxu0 0.0
        %486 = vmatpush.msra.mxu0 0.0
        %487 = vmatpush.msra.mxu0 0.0
        %488 = vmatpush.msra.mxu0 0.0
        %489 = vmatpush.msra.mxu0 0.0
        %490 = vmatpush.msra.mxu0 0.0
        %491 = vmatpush.msra.mxu0 0.0
        %492 = vmatpush.msra.mxu0 0.0
        %493 = vmatpush.msra.mxu0 0.0
        %494 = vmatpush.msra.mxu0 0.0
        %495 = vmatpush.msra.mxu0 %v481
        %496 = vmatpush.msra.mxu0 %v480
        %497 = vmatpush.msra.mxu0 %v479
        %498 = vmatpush.msra.mxu0 %v478
        %499 = vmatmul.f32.gmra.mxu0 %v420
        %v500 = vpop.f32.mrf.mxu0
        %v501 = vadd.f32 %v482, %v500
        %502 = vmatmul.f32.gmra.mxu0 %v423
        %v503 = vpop.f32.mrf.mxu0
        %v504 = vadd.f32 %v482, %v503
        %505 = vdwg.mxu0
        %vm506 = vcmask 64512
        %v508 = vsel %vm506, %v443, 0
        %v511 = vsel %vm506, %v472, 0
        %513 = vmatpush.xpose.msra.mxu0 0.0
        %514 = vmatpush.xpose.msra.mxu0 0.0
        %515 = vmatpush.xpose.msra.mxu0 0.0
        %516 = vmatpush.xpose.msra.mxu0 0.0
        %517 = vmatpush.xpose.msra.mxu0 0.0
        %518 = vmatpush.xpose.msra.mxu0 0.0
        %519 = vmatpush.xpose.msra.mxu0 0.0
        %520 = vmatpush.xpose.msra.mxu0 0.0
        %521 = vmatpush.xpose.msra.mxu0 0.0
        %522 = vmatpush.xpose.msra.mxu0 0.0
        %523 = vmatpush.xpose.msra.mxu0 0.0
        %524 = vmatpush.xpose.msra.mxu0 0.0
        %525 = vmatpush.xpose.msra.mxu0 0.0
        %526 = vmatpush.xpose.msra.mxu0 0.0
        %527 = vmatpush.xpose.msra.mxu0 0.0
        %528 = vmatpush.xpose.msra.mxu0 %v511
        %529 = vmatmul.f32.gmra.mxu0 %v508
        %v530 = vpop.f32.mrf.mxu0
        %v531 = vadd.f32 0.0, %v530
        %532 = vdwg.mxu0
        %v534 = vsel %vm506, %v446, 0
        %v537 = vsel %vm506, %v475, 0
        %539 = vmatpush.xpose.msra.mxu0 0.0
        %540 = vmatpush.xpose.msra.mxu0 0.0
        %541 = vmatpush.xpose.msra.mxu0 0.0
        %542 = vmatpush.xpose.msra.mxu0 0.0
        %543 = vmatpush.xpose.msra.mxu0 0.0
        %544 = vmatpush.xpose.msra.mxu0 0.0
        %545 = vmatpush.xpose.msra.mxu0 0.0
        %546 = vmatpush.xpose.msra.mxu0 0.0
        %547 = vmatpush.xpose.msra.mxu0 0.0
        %548 = vmatpush.xpose.msra.mxu0 0.0
        %549 = vmatpush.xpose.msra.mxu0 0.0
        %550 = vmatpush.xpose.msra.mxu0 0.0
        %551 = vmatpush.xpose.msra.mxu0 0.0
        %552 = vmatpush.xpose.msra.mxu0 0.0
        %553 = vmatpush.xpose.msra.mxu0 0.0
        %554 = vmatpush.xpose.msra.mxu0 %v537
        %555 = vmatmul.f32.gmra.mxu0 %v534
        %v556 = vpop.f32.mrf.mxu0
        %v557 = vadd.f32 0.0, %v556
        %558 = vdwg.mxu0
        %v559 = vmul.f32 %v531, 0.35355338
        %v560 = vmul.f32 %v557, 0.35355338
        %v561 = vsel %vm506, %v559, -inf
        %562 = vmax.xlane.f32.xlu0 %v561
        %v563 = vpop.xlane.xlu0 %562
        %v564 = vsel %vm506, %v560, -inf
        %565 = vmax.xlane.f32.xlu0 %v564
        %v566 = vpop.xlane.xlu0 %565
        %v567 = vsub.f32 %v559, %v563
        %v568 = vsub.f32 %v560, %v566
        %v569 = vmul.f32 %v567, 1.442695
        %v570 = vpow.pop %v569
        %v571 = vmul.f32 %v568, 1.442695
        %v572 = vpow.pop %v571
        %v573 = vsel %vm506, %v570, 0.0
        %574 = vadd.xlane.f32.xlu0 %v573
        %v575 = vpop.xlane.xlu0 %574
        %v576 = vsel %vm506, %v572, 0.0
        %577 = vadd.xlane.f32.xlu0 %v576
        %v578 = vpop.xlane.xlu0 %577
        %v579 = vrcp.pop %v575
        %v580 = vmul.f32 %v575, %v579
        %v581 = vsub.f32 1.0, %v580
        %v582 = vmul.f32 %v579, %v581
        %v583 = vadd.f32 %v579, %v582
        %vm584 = vweird.f32 %v575
        %vm585 = vweird.f32 %v579
        %vm586 = vmor %vm584, %vm585
        %v587 = vsel %vm586, %v579, %v583
        %v588 = vand.u32 2147483647, %v575
        %vm589 = vcmp.eq.f32.partialorder %v588, 8.507059e+37
        %v590 = vand.u32 %v575, 2147483648
        %v591 = vor.u32 1.1754944e-38, %v590
        %v592 = vsel %vm589, %v591, %v587
        %v593 = vrcp.pop %v578
        %v594 = vmul.f32 %v578, %v593
        %v595 = vsub.f32 1.0, %v594
        %v596 = vmul.f32 %v593, %v595
        %v597 = vadd.f32 %v593, %v596
        %vm598 = vweird.f32 %v578
        %vm599 = vweird.f32 %v593
        %vm600 = vmor %vm598, %vm599
        %v601 = vsel %vm600, %v593, %v597
        %v602 = vand.u32 2147483647, %v578
        %vm603 = vcmp.eq.f32.partialorder %v602, 8.507059e+37
        %v604 = vand.u32 %v578, 2147483648
        %v605 = vor.u32 1.1754944e-38, %v604
        %v606 = vsel %vm603, %v605, %v601
        %v607 = vmul.f32 %v570, %v592
        %v608 = vmul.f32 %v572, %v606
        %v610 = vsel %vm506, %v607, 0
        %612 = vmatpush.msra.mxu0 0.0
        %613 = vmatpush.msra.mxu0 0.0
        %614 = vmatpush.msra.mxu0 0.0
        %615 = vmatpush.msra.mxu0 0.0
        %616 = vmatpush.msra.mxu0 0.0
        %617 = vmatpush.msra.mxu0 0.0
        %618 = vmatpush.msra.mxu0 0.0
        %619 = vmatpush.msra.mxu0 0.0
        %620 = vmatpush.msra.mxu0 0.0
        %621 = vmatpush.msra.mxu0 0.0
        %622 = vmatpush.msra.mxu0 0.0
        %623 = vmatpush.msra.mxu0 0.0
        %624 = vmatpush.msra.mxu0 0.0
        %625 = vmatpush.msra.mxu0 0.0
        %626 = vmatpush.msra.mxu0 0.0
        %627 = vmatpush.msra.mxu0 %v501
        %628 = vmatmul.f32.gmra.mxu0 %v610
        %v629 = vpop.f32.mrf.mxu0
        %v630 = vadd.f32 0.0, %v629
        %631 = vdwg.mxu0
        %v633 = vsel %vm506, %v608, 0
        %635 = vmatpush.msra.mxu0 0.0
        %636 = vmatpush.msra.mxu0 0.0
        %637 = vmatpush.msra.mxu0 0.0
        %638 = vmatpush.msra.mxu0 0.0
        %639 = vmatpush.msra.mxu0 0.0
        %640 = vmatpush.msra.mxu0 0.0
        %641 = vmatpush.msra.mxu0 0.0
        %642 = vmatpush.msra.mxu0 0.0
        %643 = vmatpush.msra.mxu0 0.0
        %644 = vmatpush.msra.mxu0 0.0
        %645 = vmatpush.msra.mxu0 0.0
        %646 = vmatpush.msra.mxu0 0.0
        %647 = vmatpush.msra.mxu0 0.0
        %648 = vmatpush.msra.mxu0 0.0
        %649 = vmatpush.msra.mxu0 0.0
        %650 = vmatpush.msra.mxu0 %v504
        %651 = vmatmul.f32.gmra.mxu0 %v633
        %v652 = vpop.f32.mrf.mxu0
        %v653 = vadd.f32 0.0, %v652
        %654 = vdwg.mxu0
        %v655 = vld [vmem:[%s379] sm:$0xff]
        %s656 = scalar_lea.vmem %s374, 32
        %v657 = vld [vmem:[%s656] sm:$0xff]
        %v658 = vld [vmem:[%s656 + $0x8] sm:$0xff]
        %v659 = vld [vmem:[%s656 + $0x10] sm:$0xff]
        %v660 = vld [vmem:[%s656 + $0x18] sm:$0xff]
        %662 = vrot.lane.b32.xlu0 %v417, 120
        %v663 = vpop.permute.xlu0 %662
        %665 = vmatpush.msra.mxu0 0.0
        %666 = vmatpush.msra.mxu0 0.0
        %667 = vmatpush.msra.mxu0 0.0
        %668 = vmatpush.msra.mxu0 0.0
        %669 = vmatpush.msra.mxu0 0.0
        %670 = vmatpush.msra.mxu0 0.0
        %671 = vmatpush.msra.mxu0 0.0
        %672 = vmatpush.msra.mxu0 0.0
        %673 = vmatpush.msra.mxu0 0.0
        %674 = vmatpush.msra.mxu0 0.0
        %675 = vmatpush.msra.mxu0 0.0
        %676 = vmatpush.msra.mxu0 0.0
        %677 = vmatpush.msra.mxu0 %v660
        %678 = vmatpush.msra.mxu0 %v659
        %679 = vmatpush.msra.mxu0 %v658
        %680 = vmatpush.msra.mxu0 %v657
        %681 = vmatmul.f32.gmra.mxu0 %v420
        %v682 = vpop.f32.mrf.mxu0
        %v683 = vadd.f32 %v663, %v682
        %684 = vmatmul.f32.gmra.mxu0 %v423
        %v685 = vpop.f32.mrf.mxu0
        %v686 = vadd.f32 %v663, %v685
        %687 = vdwg.mxu0
        %s688 = scalar_lea.vmem %s374, 160
        %v689 = vld [vmem:[%s688] sm:$0xff]
        %v690 = vld [vmem:[%s688 + $0x8] sm:$0xff]
        %v691 = vld [vmem:[%s688 + $0x10] sm:$0xff]
        %v692 = vld [vmem:[%s688 + $0x18] sm:$0xff]
        %694 = vrot.lane.b32.xlu0 %v453, 120
        %v695 = vpop.permute.xlu0 %694
        %697 = vmatpush.msra.mxu0 0.0
        %698 = vmatpush.msra.mxu0 0.0
        %699 = vmatpush.msra.mxu0 0.0
        %700 = vmatpush.msra.mxu0 0.0
        %701 = vmatpush.msra.mxu0 0.0
        %702 = vmatpush.msra.mxu0 0.0
        %703 = vmatpush.msra.mxu0 0.0
        %704 = vmatpush.msra.mxu0 0.0
        %705 = vmatpush.msra.mxu0 0.0
        %706 = vmatpush.msra.mxu0 0.0
        %707 = vmatpush.msra.mxu0 0.0
        %708 = vmatpush.msra.mxu0 0.0
        %709 = vmatpush.msra.mxu0 %v692
        %710 = vmatpush.msra.mxu0 %v691
        %711 = vmatpush.msra.mxu0 %v690
        %712 = vmatpush.msra.mxu0 %v689
        %713 = vmatmul.f32.gmra.mxu0 %v420
        %v714 = vpop.f32.mrf.mxu0
        %v715 = vadd.f32 %v695, %v714
        %716 = vmatmul.f32.gmra.mxu0 %v423
        %v717 = vpop.f32.mrf.mxu0
        %v718 = vadd.f32 %v695, %v717
        %719 = vdwg.mxu0
        %s720 = scalar_lea.vmem %s374, 288
        %v721 = vld [vmem:[%s720] sm:$0xff]
        %v722 = vld [vmem:[%s720 + $0x8] sm:$0xff]
        %v723 = vld [vmem:[%s720 + $0x10] sm:$0xff]
        %v724 = vld [vmem:[%s720 + $0x18] sm:$0xff]
        %726 = vrot.lane.b32.xlu0 %v482, 120
        %v727 = vpop.permute.xlu0 %726
        %729 = vmatpush.msra.mxu0 0.0
        %730 = vmatpush.msra.mxu0 0.0
        %731 = vmatpush.msra.mxu0 0.0
        %732 = vmatpush.msra.mxu0 0.0
        %733 = vmatpush.msra.mxu0 0.0
        %734 = vmatpush.msra.mxu0 0.0
        %735 = vmatpush.msra.mxu0 0.0
        %736 = vmatpush.msra.mxu0 0.0
        %737 = vmatpush.msra.mxu0 0.0
        %738 = vmatpush.msra.mxu0 0.0
        %739 = vmatpush.msra.mxu0 0.0
        %740 = vmatpush.msra.mxu0 0.0
        %741 = vmatpush.msra.mxu0 %v724
        %742 = vmatpush.msra.mxu0 %v723
        %743 = vmatpush.msra.mxu0 %v722
        %744 = vmatpush.msra.mxu0 %v721
        %745 = vmatmul.f32.gmra.mxu0 %v420
        %v746 = vpop.f32.mrf.mxu0
        %v747 = vadd.f32 %v727, %v746
        %748 = vmatmul.f32.gmra.mxu0 %v423
        %v749 = vpop.f32.mrf.mxu0
        %v750 = vadd.f32 %v727, %v749
        %751 = vdwg.mxu0
        %v753 = vsel %vm506, %v683, 0
        %v756 = vsel %vm506, %v715, 0
        %758 = vmatpush.xpose.msra.mxu0 0.0
        %759 = vmatpush.xpose.msra.mxu0 0.0
        %760 = vmatpush.xpose.msra.mxu0 0.0
        %761 = vmatpush.xpose.msra.mxu0 0.0
        %762 = vmatpush.xpose.msra.mxu0 0.0
        %763 = vmatpush.xpose.msra.mxu0 0.0
        %764 = vmatpush.xpose.msra.mxu0 0.0
        %765 = vmatpush.xpose.msra.mxu0 0.0
        %766 = vmatpush.xpose.msra.mxu0 0.0
        %767 = vmatpush.xpose.msra.mxu0 0.0
        %768 = vmatpush.xpose.msra.mxu0 0.0
        %769 = vmatpush.xpose.msra.mxu0 0.0
        %770 = vmatpush.xpose.msra.mxu0 0.0
        %771 = vmatpush.xpose.msra.mxu0 0.0
        %772 = vmatpush.xpose.msra.mxu0 0.0
        %773 = vmatpush.xpose.msra.mxu0 %v756
        %774 = vmatmul.f32.gmra.mxu0 %v753
        %v775 = vpop.f32.mrf.mxu0
        %v776 = vadd.f32 0.0, %v775
        %777 = vdwg.mxu0
        %v779 = vsel %vm506, %v686, 0
        %v782 = vsel %vm506, %v718, 0
        %784 = vmatpush.xpose.msra.mxu0 0.0
        %785 = vmatpush.xpose.msra.mxu0 0.0
        %786 = vmatpush.xpose.msra.mxu0 0.0
        %787 = vmatpush.xpose.msra.mxu0 0.0
        %788 = vmatpush.xpose.msra.mxu0 0.0
        %789 = vmatpush.xpose.msra.mxu0 0.0
        %790 = vmatpush.xpose.msra.mxu0 0.0
        %791 = vmatpush.xpose.msra.mxu0 0.0
        %792 = vmatpush.xpose.msra.mxu0 0.0
        %793 = vmatpush.xpose.msra.mxu0 0.0
        %794 = vmatpush.xpose.msra.mxu0 0.0
        %795 = vmatpush.xpose.msra.mxu0 0.0
        %796 = vmatpush.xpose.msra.mxu0 0.0
        %797 = vmatpush.xpose.msra.mxu0 0.0
        %798 = vmatpush.xpose.msra.mxu0 0.0
        %799 = vmatpush.xpose.msra.mxu0 %v782
        %800 = vmatmul.f32.gmra.mxu0 %v779
        %v801 = vpop.f32.mrf.mxu0
        %v802 = vadd.f32 0.0, %v801
        %803 = vdwg.mxu0
        %v804 = vmul.f32 %v776, 0.35355338
        %v805 = vmul.f32 %v802, 0.35355338
        %v806 = vsel %vm506, %v804, -inf
        %807 = vmax.xlane.f32.xlu0 %v806
        %v808 = vpop.xlane.xlu0 %807
        %v809 = vsel %vm506, %v805, -inf
        %810 = vmax.xlane.f32.xlu0 %v809
        %v811 = vpop.xlane.xlu0 %810
        %v812 = vsub.f32 %v804, %v808
        %v813 = vsub.f32 %v805, %v811
        %v814 = vmul.f32 %v812, 1.442695
        %v815 = vpow.pop %v814
        %v816 = vmul.f32 %v813, 1.442695
        %v817 = vpow.pop %v816
        %v818 = vsel %vm506, %v815, 0.0
        %819 = vadd.xlane.f32.xlu0 %v818
        %v820 = vpop.xlane.xlu0 %819
        %v821 = vsel %vm506, %v817, 0.0
        %822 = vadd.xlane.f32.xlu0 %v821
        %v823 = vpop.xlane.xlu0 %822
        %v824 = vrcp.pop %v820
        %v825 = vmul.f32 %v820, %v824
        %v826 = vsub.f32 1.0, %v825
        %v827 = vmul.f32 %v824, %v826
        %v828 = vadd.f32 %v824, %v827
        %vm829 = vweird.f32 %v820
        %vm830 = vweird.f32 %v824
        %vm831 = vmor %vm829, %vm830
        %v832 = vsel %vm831, %v824, %v828
        %v833 = vand.u32 2147483647, %v820
        %vm834 = vcmp.eq.f32.partialorder %v833, 8.507059e+37
        %v835 = vand.u32 %v820, 2147483648
        %v836 = vor.u32 1.1754944e-38, %v835
        %v837 = vsel %vm834, %v836, %v832
        %v838 = vrcp.pop %v823
        %v839 = vmul.f32 %v823, %v838
        %v840 = vsub.f32 1.0, %v839
        %v841 = vmul.f32 %v838, %v840
        %v842 = vadd.f32 %v838, %v841
        %vm843 = vweird.f32 %v823
        %vm844 = vweird.f32 %v838
        %vm845 = vmor %vm843, %vm844
        %v846 = vsel %vm845, %v838, %v842
        %v847 = vand.u32 2147483647, %v823
        %vm848 = vcmp.eq.f32.partialorder %v847, 8.507059e+37
        %v849 = vand.u32 %v823, 2147483648
        %v850 = vor.u32 1.1754944e-38, %v849
        %v851 = vsel %vm848, %v850, %v846
        %v852 = vmul.f32 %v815, %v837
        %v853 = vmul.f32 %v817, %v851
        %v855 = vsel %vm506, %v852, 0
        %857 = vmatpush.msra.mxu0 0.0
        %858 = vmatpush.msra.mxu0 0.0
        %859 = vmatpush.msra.mxu0 0.0
        %860 = vmatpush.msra.mxu0 0.0
        %861 = vmatpush.msra.mxu0 0.0
        %862 = vmatpush.msra.mxu0 0.0
        %863 = vmatpush.msra.mxu0 0.0
        %864 = vmatpush.msra.mxu0 0.0
        %865 = vmatpush.msra.mxu0 0.0
        %866 = vmatpush.msra.mxu0 0.0
        %867 = vmatpush.msra.mxu0 0.0
        %868 = vmatpush.msra.mxu0 0.0
        %869 = vmatpush.msra.mxu0 0.0
        %870 = vmatpush.msra.mxu0 0.0
        %871 = vmatpush.msra.mxu0 0.0
        %872 = vmatpush.msra.mxu0 %v747
        %873 = vmatmul.f32.gmra.mxu0 %v855
        %v874 = vpop.f32.mrf.mxu0
        %v875 = vadd.f32 0.0, %v874
        %876 = vdwg.mxu0
        %v878 = vsel %vm506, %v853, 0
        %880 = vmatpush.msra.mxu0 0.0
        %881 = vmatpush.msra.mxu0 0.0
        %882 = vmatpush.msra.mxu0 0.0
        %883 = vmatpush.msra.mxu0 0.0
        %884 = vmatpush.msra.mxu0 0.0
        %885 = vmatpush.msra.mxu0 0.0
        %886 = vmatpush.msra.mxu0 0.0
        %887 = vmatpush.msra.mxu0 0.0
        %888 = vmatpush.msra.mxu0 0.0
        %889 = vmatpush.msra.mxu0 0.0
        %890 = vmatpush.msra.mxu0 0.0
        %891 = vmatpush.msra.mxu0 0.0
        %892 = vmatpush.msra.mxu0 0.0
        %893 = vmatpush.msra.mxu0 0.0
        %894 = vmatpush.msra.mxu0 0.0
        %895 = vmatpush.msra.mxu0 %v750
        %896 = vmatmul.f32.gmra.mxu0 %v878
        %v897 = vpop.f32.mrf.mxu0
        %v898 = vadd.f32 0.0, %v897
        %899 = vdwg.mxu0
        %s900 = scalar_lea.vmem %s379, 8
        %v901 = vld [vmem:[%s900] sm:$0xff]
        %v903 = vsel %vm506, %v875, 0
        %v906 = vsel %vm506, %v898, 0
        %908 = vmatpush.msra.mxu0 0.0
        %909 = vmatpush.msra.mxu0 0.0
        %910 = vmatpush.msra.mxu0 0.0
        %911 = vmatpush.msra.mxu0 0.0
        %912 = vmatpush.msra.mxu0 0.0
        %913 = vmatpush.msra.mxu0 0.0
        %914 = vmatpush.msra.mxu0 0.0
        %915 = vmatpush.msra.mxu0 0.0
        %916 = vmatpush.msra.mxu0 0.0
        %917 = vmatpush.msra.mxu0 0.0
        %918 = vmatpush.msra.mxu0 0.0
        %919 = vmatpush.msra.mxu0 0.0
        %920 = vmatpush.msra.mxu0 0.0
        %921 = vmatpush.msra.mxu0 0.0
        %922 = vmatpush.msra.mxu0 0.0
        %923 = vmatpush.msra.mxu0 %v901
        %924 = vmatmul.f32.gmra.mxu0 %v903
        %v925 = vpop.f32.mrf.mxu0
        %v926 = vadd.f32 0.0, %v925
        %927 = vmatmul.f32.gmra.mxu0 %v906
        %v928 = vpop.f32.mrf.mxu0
        %v929 = vadd.f32 0.0, %v928
        %930 = vdwg.mxu0
        %v932 = vsel %vm506, %v630, 0
        %v935 = vsel %vm506, %v653, 0
        %937 = vmatpush.msra.mxu0 0.0
        %938 = vmatpush.msra.mxu0 0.0
        %939 = vmatpush.msra.mxu0 0.0
        %940 = vmatpush.msra.mxu0 0.0
        %941 = vmatpush.msra.mxu0 0.0
        %942 = vmatpush.msra.mxu0 0.0
        %943 = vmatpush.msra.mxu0 0.0
        %944 = vmatpush.msra.mxu0 0.0
        %945 = vmatpush.msra.mxu0 0.0
        %946 = vmatpush.msra.mxu0 0.0
        %947 = vmatpush.msra.mxu0 0.0
        %948 = vmatpush.msra.mxu0 0.0
        %949 = vmatpush.msra.mxu0 0.0
        %950 = vmatpush.msra.mxu0 0.0
        %951 = vmatpush.msra.mxu0 0.0
        %952 = vmatpush.msra.mxu0 %v655
        %953 = vmatmul.f32.gmra.mxu0 %v932
        %v954 = vpop.f32.mrf.mxu0
        %v955 = vadd.f32 %v926, %v954
        %956 = vmatmul.f32.gmra.mxu0 %v935
        %v957 = vpop.f32.mrf.mxu0
        %v958 = vadd.f32 %v929, %v957
        %959 = vdwg.mxu0
        %s960 = scalar_lea.vmem %s374, 64
        %v961 = vld [vmem:[%s960] sm:$0xff]
        %v962 = vld [vmem:[%s960 + $0x8] sm:$0xff]
        %v963 = vld [vmem:[%s960 + $0x10] sm:$0xff]
        %v964 = vld [vmem:[%s960 + $0x18] sm:$0xff]
        %965 = vrot.lane.b32.xlu0 %v417, 112
        %v966 = vpop.permute.xlu0 %965
        %968 = vmatpush.msra.mxu0 0.0
        %969 = vmatpush.msra.mxu0 0.0
        %970 = vmatpush.msra.mxu0 0.0
        %971 = vmatpush.msra.mxu0 0.0
        %972 = vmatpush.msra.mxu0 0.0
        %973 = vmatpush.msra.mxu0 0.0
        %974 = vmatpush.msra.mxu0 0.0
        %975 = vmatpush.msra.mxu0 0.0
        %976 = vmatpush.msra.mxu0 0.0
        %977 = vmatpush.msra.mxu0 0.0
        %978 = vmatpush.msra.mxu0 0.0
        %979 = vmatpush.msra.mxu0 0.0
        %980 = vmatpush.msra.mxu0 %v964
        %981 = vmatpush.msra.mxu0 %v963
        %982 = vmatpush.msra.mxu0 %v962
        %983 = vmatpush.msra.mxu0 %v961
        %984 = vmatmul.f32.gmra.mxu0 %v420
        %v985 = vpop.f32.mrf.mxu0
        %v986 = vadd.f32 %v966, %v985
        %987 = vmatmul.f32.gmra.mxu0 %v423
        %v988 = vpop.f32.mrf.mxu0
        %v989 = vadd.f32 %v966, %v988
        %990 = vdwg.mxu0
        %s991 = scalar_lea.vmem %s374, 192
        %v992 = vld [vmem:[%s991] sm:$0xff]
        %v993 = vld [vmem:[%s991 + $0x8] sm:$0xff]
        %v994 = vld [vmem:[%s991 + $0x10] sm:$0xff]
        %v995 = vld [vmem:[%s991 + $0x18] sm:$0xff]
        %996 = vrot.lane.b32.xlu0 %v453, 112
        %v997 = vpop.permute.xlu0 %996
        %999 = vmatpush.msra.mxu0 0.0
        %1000 = vmatpush.msra.mxu0 0.0
        %1001 = vmatpush.msra.mxu0 0.0
        %1002 = vmatpush.msra.mxu0 0.0
        %1003 = vmatpush.msra.mxu0 0.0
        %1004 = vmatpush.msra.mxu0 0.0
        %1005 = vmatpush.msra.mxu0 0.0
        %1006 = vmatpush.msra.mxu0 0.0
        %1007 = vmatpush.msra.mxu0 0.0
        %1008 = vmatpush.msra.mxu0 0.0
        %1009 = vmatpush.msra.mxu0 0.0
        %1010 = vmatpush.msra.mxu0 0.0
        %1011 = vmatpush.msra.mxu0 %v995
        %1012 = vmatpush.msra.mxu0 %v994
        %1013 = vmatpush.msra.mxu0 %v993
        %1014 = vmatpush.msra.mxu0 %v992
        %1015 = vmatmul.f32.gmra.mxu0 %v420
        %v1016 = vpop.f32.mrf.mxu0
        %v1017 = vadd.f32 %v997, %v1016
        %1018 = vmatmul.f32.gmra.mxu0 %v423
        %v1019 = vpop.f32.mrf.mxu0
        %v1020 = vadd.f32 %v997, %v1019
        %1021 = vdwg.mxu0
        %s1022 = scalar_lea.vmem %s374, 320
        %v1023 = vld [vmem:[%s1022] sm:$0xff]
        %v1024 = vld [vmem:[%s1022 + $0x8] sm:$0xff]
        %v1025 = vld [vmem:[%s1022 + $0x10] sm:$0xff]
        %v1026 = vld [vmem:[%s1022 + $0x18] sm:$0xff]
        %1027 = vrot.lane.b32.xlu0 %v482, 112
        %v1028 = vpop.permute.xlu0 %1027
        %1030 = vmatpush.msra.mxu0 0.0
        %1031 = vmatpush.msra.mxu0 0.0
        %1032 = vmatpush.msra.mxu0 0.0
        %1033 = vmatpush.msra.mxu0 0.0
        %1034 = vmatpush.msra.mxu0 0.0
        %1035 = vmatpush.msra.mxu0 0.0
        %1036 = vmatpush.msra.mxu0 0.0
        %1037 = vmatpush.msra.mxu0 0.0
        %1038 = vmatpush.msra.mxu0 0.0
        %1039 = vmatpush.msra.mxu0 0.0
        %1040 = vmatpush.msra.mxu0 0.0
        %1041 = vmatpush.msra.mxu0 0.0
        %1042 = vmatpush.msra.mxu0 %v1026
        %1043 = vmatpush.msra.mxu0 %v1025
        %1044 = vmatpush.msra.mxu0 %v1024
        %1045 = vmatpush.msra.mxu0 %v1023
        %1046 = vmatmul.f32.gmra.mxu0 %v420
        %v1047 = vpop.f32.mrf.mxu0
        %v1048 = vadd.f32 %v1028, %v1047
        %1049 = vmatmul.f32.gmra.mxu0 %v423
        %v1050 = vpop.f32.mrf.mxu0
        %v1051 = vadd.f32 %v1028, %v1050
        %1052 = vdwg.mxu0
        %v1054 = vsel %vm506, %v986, 0
        %v1057 = vsel %vm506, %v1017, 0
        %1059 = vmatpush.xpose.msra.mxu0 0.0
        %1060 = vmatpush.xpose.msra.mxu0 0.0
        %1061 = vmatpush.xpose.msra.mxu0 0.0
        %1062 = vmatpush.xpose.msra.mxu0 0.0
        %1063 = vmatpush.xpose.msra.mxu0 0.0
        %1064 = vmatpush.xpose.msra.mxu0 0.0
        %1065 = vmatpush.xpose.msra.mxu0 0.0
        %1066 = vmatpush.xpose.msra.mxu0 0.0
        %1067 = vmatpush.xpose.msra.mxu0 0.0
        %1068 = vmatpush.xpose.msra.mxu0 0.0
        %1069 = vmatpush.xpose.msra.mxu0 0.0
        %1070 = vmatpush.xpose.msra.mxu0 0.0
        %1071 = vmatpush.xpose.msra.mxu0 0.0
        %1072 = vmatpush.xpose.msra.mxu0 0.0
        %1073 = vmatpush.xpose.msra.mxu0 0.0
        %1074 = vmatpush.xpose.msra.mxu0 %v1057
        %1075 = vmatmul.f32.gmra.mxu0 %v1054
        %v1076 = vpop.f32.mrf.mxu0
        %v1077 = vadd.f32 0.0, %v1076
        %1078 = vdwg.mxu0
        %v1080 = vsel %vm506, %v989, 0
        %v1083 = vsel %vm506, %v1020, 0
        %1085 = vmatpush.xpose.msra.mxu0 0.0
        %1086 = vmatpush.xpose.msra.mxu0 0.0
        %1087 = vmatpush.xpose.msra.mxu0 0.0
        %1088 = vmatpush.xpose.msra.mxu0 0.0
        %1089 = vmatpush.xpose.msra.mxu0 0.0
        %1090 = vmatpush.xpose.msra.mxu0 0.0
        %1091 = vmatpush.xpose.msra.mxu0 0.0
        %1092 = vmatpush.xpose.msra.mxu0 0.0
        %1093 = vmatpush.xpose.msra.mxu0 0.0
        %1094 = vmatpush.xpose.msra.mxu0 0.0
        %1095 = vmatpush.xpose.msra.mxu0 0.0
        %1096 = vmatpush.xpose.msra.mxu0 0.0
        %1097 = vmatpush.xpose.msra.mxu0 0.0
        %1098 = vmatpush.xpose.msra.mxu0 0.0
        %1099 = vmatpush.xpose.msra.mxu0 0.0
        %1100 = vmatpush.xpose.msra.mxu0 %v1083
        %1101 = vmatmul.f32.gmra.mxu0 %v1080
        %v1102 = vpop.f32.mrf.mxu0
        %v1103 = vadd.f32 0.0, %v1102
        %1104 = vdwg.mxu0
        %v1105 = vmul.f32 %v1077, 0.35355338
        %v1106 = vmul.f32 %v1103, 0.35355338
        %v1107 = vsel %vm506, %v1105, -inf
        %1108 = vmax.xlane.f32.xlu0 %v1107
        %v1109 = vpop.xlane.xlu0 %1108
        %v1110 = vsel %vm506, %v1106, -inf
        %1111 = vmax.xlane.f32.xlu0 %v1110
        %v1112 = vpop.xlane.xlu0 %1111
        %v1113 = vsub.f32 %v1105, %v1109
        %v1114 = vsub.f32 %v1106, %v1112
        %v1115 = vmul.f32 %v1113, 1.442695
        %v1116 = vpow.pop %v1115
        %v1117 = vmul.f32 %v1114, 1.442695
        %v1118 = vpow.pop %v1117
        %v1119 = vsel %vm506, %v1116, 0.0
        %1120 = vadd.xlane.f32.xlu0 %v1119
        %v1121 = vpop.xlane.xlu0 %1120
        %v1122 = vsel %vm506, %v1118, 0.0
        %1123 = vadd.xlane.f32.xlu0 %v1122
        %v1124 = vpop.xlane.xlu0 %1123
        %v1125 = vrcp.pop %v1121
        %v1126 = vmul.f32 %v1121, %v1125
        %v1127 = vsub.f32 1.0, %v1126
        %v1128 = vmul.f32 %v1125, %v1127
        %v1129 = vadd.f32 %v1125, %v1128
        %vm1130 = vweird.f32 %v1121
        %vm1131 = vweird.f32 %v1125
        %vm1132 = vmor %vm1130, %vm1131
        %v1133 = vsel %vm1132, %v1125, %v1129
        %v1134 = vand.u32 2147483647, %v1121
        %vm1135 = vcmp.eq.f32.partialorder %v1134, 8.507059e+37
        %v1136 = vand.u32 %v1121, 2147483648
        %v1137 = vor.u32 1.1754944e-38, %v1136
        %v1138 = vsel %vm1135, %v1137, %v1133
        %v1139 = vrcp.pop %v1124
        %v1140 = vmul.f32 %v1124, %v1139
        %v1141 = vsub.f32 1.0, %v1140
        %v1142 = vmul.f32 %v1139, %v1141
        %v1143 = vadd.f32 %v1139, %v1142
        %vm1144 = vweird.f32 %v1124
        %vm1145 = vweird.f32 %v1139
        %vm1146 = vmor %vm1144, %vm1145
        %v1147 = vsel %vm1146, %v1139, %v1143
        %v1148 = vand.u32 2147483647, %v1124
        %vm1149 = vcmp.eq.f32.partialorder %v1148, 8.507059e+37
        %v1150 = vand.u32 %v1124, 2147483648
        %v1151 = vor.u32 1.1754944e-38, %v1150
        %v1152 = vsel %vm1149, %v1151, %v1147
        %v1153 = vmul.f32 %v1116, %v1138
        %v1154 = vmul.f32 %v1118, %v1152
        %v1156 = vsel %vm506, %v1153, 0
        %1158 = vmatpush.msra.mxu0 0.0
        %1159 = vmatpush.msra.mxu0 0.0
        %1160 = vmatpush.msra.mxu0 0.0
        %1161 = vmatpush.msra.mxu0 0.0
        %1162 = vmatpush.msra.mxu0 0.0
        %1163 = vmatpush.msra.mxu0 0.0
        %1164 = vmatpush.msra.mxu0 0.0
        %1165 = vmatpush.msra.mxu0 0.0
        %1166 = vmatpush.msra.mxu0 0.0
        %1167 = vmatpush.msra.mxu0 0.0
        %1168 = vmatpush.msra.mxu0 0.0
        %1169 = vmatpush.msra.mxu0 0.0
        %1170 = vmatpush.msra.mxu0 0.0
        %1171 = vmatpush.msra.mxu0 0.0
        %1172 = vmatpush.msra.mxu0 0.0
        %1173 = vmatpush.msra.mxu0 %v1048
        %1174 = vmatmul.f32.gmra.mxu0 %v1156
        %v1175 = vpop.f32.mrf.mxu0
        %v1176 = vadd.f32 0.0, %v1175
        %1177 = vdwg.mxu0
        %v1179 = vsel %vm506, %v1154, 0
        %1181 = vmatpush.msra.mxu0 0.0
        %1182 = vmatpush.msra.mxu0 0.0
        %1183 = vmatpush.msra.mxu0 0.0
        %1184 = vmatpush.msra.mxu0 0.0
        %1185 = vmatpush.msra.mxu0 0.0
        %1186 = vmatpush.msra.mxu0 0.0
        %1187 = vmatpush.msra.mxu0 0.0
        %1188 = vmatpush.msra.mxu0 0.0
        %1189 = vmatpush.msra.mxu0 0.0
        %1190 = vmatpush.msra.mxu0 0.0
        %1191 = vmatpush.msra.mxu0 0.0
        %1192 = vmatpush.msra.mxu0 0.0
        %1193 = vmatpush.msra.mxu0 0.0
        %1194 = vmatpush.msra.mxu0 0.0
        %1195 = vmatpush.msra.mxu0 0.0
        %1196 = vmatpush.msra.mxu0 %v1051
        %1197 = vmatmul.f32.gmra.mxu0 %v1179
        %v1198 = vpop.f32.mrf.mxu0
        %v1199 = vadd.f32 0.0, %v1198
        %1200 = vdwg.mxu0
        %s1201 = scalar_lea.vmem %s379, 16
        %v1202 = vld [vmem:[%s1201] sm:$0xff]
        %v1204 = vsel %vm506, %v1176, 0
        %v1207 = vsel %vm506, %v1199, 0
        %1209 = vmatpush.msra.mxu0 0.0
        %1210 = vmatpush.msra.mxu0 0.0
        %1211 = vmatpush.msra.mxu0 0.0
        %1212 = vmatpush.msra.mxu0 0.0
        %1213 = vmatpush.msra.mxu0 0.0
        %1214 = vmatpush.msra.mxu0 0.0
        %1215 = vmatpush.msra.mxu0 0.0
        %1216 = vmatpush.msra.mxu0 0.0
        %1217 = vmatpush.msra.mxu0 0.0
        %1218 = vmatpush.msra.mxu0 0.0
        %1219 = vmatpush.msra.mxu0 0.0
        %1220 = vmatpush.msra.mxu0 0.0
        %1221 = vmatpush.msra.mxu0 0.0
        %1222 = vmatpush.msra.mxu0 0.0
        %1223 = vmatpush.msra.mxu0 0.0
        %1224 = vmatpush.msra.mxu0 %v1202
        %1225 = vmatmul.f32.gmra.mxu0 %v1204
        %v1226 = vpop.f32.mrf.mxu0
        %v1227 = vadd.f32 0.0, %v1226
        %1228 = vmatmul.f32.gmra.mxu0 %v1207
        %v1229 = vpop.f32.mrf.mxu0
        %v1230 = vadd.f32 0.0, %v1229
        %1231 = vdwg.mxu0
        %v1232 = vadd.f32 %v955, %v1227
        %v1233 = vadd.f32 %v958, %v1230
        %s1234 = scalar_lea.vmem %s374, 96
        %v1235 = vld [vmem:[%s1234] sm:$0xff]
        %v1236 = vld [vmem:[%s1234 + $0x8] sm:$0xff]
        %v1237 = vld [vmem:[%s1234 + $0x10] sm:$0xff]
        %v1238 = vld [vmem:[%s1234 + $0x18] sm:$0xff]
        %1239 = vrot.lane.b32.xlu0 %v417, 104
        %v1240 = vpop.permute.xlu0 %1239
        %1242 = vmatpush.msra.mxu0 0.0
        %1243 = vmatpush.msra.mxu0 0.0
        %1244 = vmatpush.msra.mxu0 0.0
        %1245 = vmatpush.msra.mxu0 0.0
        %1246 = vmatpush.msra.mxu0 0.0
        %1247 = vmatpush.msra.mxu0 0.0
        %1248 = vmatpush.msra.mxu0 0.0
        %1249 = vmatpush.msra.mxu0 0.0
        %1250 = vmatpush.msra.mxu0 0.0
        %1251 = vmatpush.msra.mxu0 0.0
        %1252 = vmatpush.msra.mxu0 0.0
        %1253 = vmatpush.msra.mxu0 0.0
        %1254 = vmatpush.msra.mxu0 %v1238
        %1255 = vmatpush.msra.mxu0 %v1237
        %1256 = vmatpush.msra.mxu0 %v1236
        %1257 = vmatpush.msra.mxu0 %v1235
        %1258 = vmatmul.f32.gmra.mxu0 %v420
        %v1259 = vpop.f32.mrf.mxu0
        %v1260 = vadd.f32 %v1240, %v1259
        %1261 = vmatmul.f32.gmra.mxu0 %v423
        %v1262 = vpop.f32.mrf.mxu0
        %v1263 = vadd.f32 %v1240, %v1262
        %1264 = vdwg.mxu0
        %s1265 = scalar_lea.vmem %s374, 224
        %v1266 = vld [vmem:[%s1265] sm:$0xff]
        %v1267 = vld [vmem:[%s1265 + $0x8] sm:$0xff]
        %v1268 = vld [vmem:[%s1265 + $0x10] sm:$0xff]
        %v1269 = vld [vmem:[%s1265 + $0x18] sm:$0xff]
        %1270 = vrot.lane.b32.xlu0 %v453, 104
        %v1271 = vpop.permute.xlu0 %1270
        %1273 = vmatpush.msra.mxu0 0.0
        %1274 = vmatpush.msra.mxu0 0.0
        %1275 = vmatpush.msra.mxu0 0.0
        %1276 = vmatpush.msra.mxu0 0.0
        %1277 = vmatpush.msra.mxu0 0.0
        %1278 = vmatpush.msra.mxu0 0.0
        %1279 = vmatpush.msra.mxu0 0.0
        %1280 = vmatpush.msra.mxu0 0.0
        %1281 = vmatpush.msra.mxu0 0.0
        %1282 = vmatpush.msra.mxu0 0.0
        %1283 = vmatpush.msra.mxu0 0.0
        %1284 = vmatpush.msra.mxu0 0.0
        %1285 = vmatpush.msra.mxu0 %v1269
        %1286 = vmatpush.msra.mxu0 %v1268
        %1287 = vmatpush.msra.mxu0 %v1267
        %1288 = vmatpush.msra.mxu0 %v1266
        %1289 = vmatmul.f32.gmra.mxu0 %v420
        %v1290 = vpop.f32.mrf.mxu0
        %v1291 = vadd.f32 %v1271, %v1290
        %1292 = vmatmul.f32.gmra.mxu0 %v423
        %v1293 = vpop.f32.mrf.mxu0
        %v1294 = vadd.f32 %v1271, %v1293
        %1295 = vdwg.mxu0
        %s1296 = scalar_lea.vmem %s374, 352
        %v1297 = vld [vmem:[%s1296] sm:$0xff]
        %v1298 = vld [vmem:[%s1296 + $0x8] sm:$0xff]
        %v1299 = vld [vmem:[%s1296 + $0x10] sm:$0xff]
        %v1300 = vld [vmem:[%s1296 + $0x18] sm:$0xff]
        %1301 = vrot.lane.b32.xlu0 %v482, 104
        %v1302 = vpop.permute.xlu0 %1301
        %1304 = vmatpush.msra.mxu0 0.0
        %1305 = vmatpush.msra.mxu0 0.0
        %1306 = vmatpush.msra.mxu0 0.0
        %1307 = vmatpush.msra.mxu0 0.0
        %1308 = vmatpush.msra.mxu0 0.0
        %1309 = vmatpush.msra.mxu0 0.0
        %1310 = vmatpush.msra.mxu0 0.0
        %1311 = vmatpush.msra.mxu0 0.0
        %1312 = vmatpush.msra.mxu0 0.0
        %1313 = vmatpush.msra.mxu0 0.0
        %1314 = vmatpush.msra.mxu0 0.0
        %1315 = vmatpush.msra.mxu0 0.0
        %1316 = vmatpush.msra.mxu0 %v1300
        %1317 = vmatpush.msra.mxu0 %v1299
        %1318 = vmatpush.msra.mxu0 %v1298
        %1319 = vmatpush.msra.mxu0 %v1297
        %1320 = vmatmul.f32.gmra.mxu0 %v420
        %v1321 = vpop.f32.mrf.mxu0
        %v1322 = vadd.f32 %v1302, %v1321
        %1323 = vmatmul.f32.gmra.mxu0 %v423
        %v1324 = vpop.f32.mrf.mxu0
        %v1325 = vadd.f32 %v1302, %v1324
        %1326 = vdwg.mxu0
        %v1328 = vsel %vm506, %v1260, 0
        %v1331 = vsel %vm506, %v1291, 0
        %1333 = vmatpush.xpose.msra.mxu0 0.0
        %1334 = vmatpush.xpose.msra.mxu0 0.0
        %1335 = vmatpush.xpose.msra.mxu0 0.0
        %1336 = vmatpush.xpose.msra.mxu0 0.0
        %1337 = vmatpush.xpose.msra.mxu0 0.0
        %1338 = vmatpush.xpose.msra.mxu0 0.0
        %1339 = vmatpush.xpose.msra.mxu0 0.0
        %1340 = vmatpush.xpose.msra.mxu0 0.0
        %1341 = vmatpush.xpose.msra.mxu0 0.0
        %1342 = vmatpush.xpose.msra.mxu0 0.0
        %1343 = vmatpush.xpose.msra.mxu0 0.0
        %1344 = vmatpush.xpose.msra.mxu0 0.0
        %1345 = vmatpush.xpose.msra.mxu0 0.0
        %1346 = vmatpush.xpose.msra.mxu0 0.0
        %1347 = vmatpush.xpose.msra.mxu0 0.0
        %1348 = vmatpush.xpose.msra.mxu0 %v1331
        %1349 = vmatmul.f32.gmra.mxu0 %v1328
        %v1350 = vpop.f32.mrf.mxu0
        %v1351 = vadd.f32 0.0, %v1350
        %1352 = vdwg.mxu0
        %v1354 = vsel %vm506, %v1263, 0
        %v1357 = vsel %vm506, %v1294, 0
        %1359 = vmatpush.xpose.msra.mxu0 0.0
        %1360 = vmatpush.xpose.msra.mxu0 0.0
        %1361 = vmatpush.xpose.msra.mxu0 0.0
        %1362 = vmatpush.xpose.msra.mxu0 0.0
        %1363 = vmatpush.xpose.msra.mxu0 0.0
        %1364 = vmatpush.xpose.msra.mxu0 0.0
        %1365 = vmatpush.xpose.msra.mxu0 0.0
        %1366 = vmatpush.xpose.msra.mxu0 0.0
        %1367 = vmatpush.xpose.msra.mxu0 0.0
        %1368 = vmatpush.xpose.msra.mxu0 0.0
        %1369 = vmatpush.xpose.msra.mxu0 0.0
        %1370 = vmatpush.xpose.msra.mxu0 0.0
        %1371 = vmatpush.xpose.msra.mxu0 0.0
        %1372 = vmatpush.xpose.msra.mxu0 0.0
        %1373 = vmatpush.xpose.msra.mxu0 0.0
        %1374 = vmatpush.xpose.msra.mxu0 %v1357
        %1375 = vmatmul.f32.gmra.mxu0 %v1354
        %v1376 = vpop.f32.mrf.mxu0
        %v1377 = vadd.f32 0.0, %v1376
        %1378 = vdwg.mxu0
        %v1379 = vmul.f32 %v1351, 0.35355338
        %v1380 = vmul.f32 %v1377, 0.35355338
        %v1381 = vsel %vm506, %v1379, -inf
        %1382 = vmax.xlane.f32.xlu0 %v1381
        %v1383 = vpop.xlane.xlu0 %1382
        %v1384 = vsel %vm506, %v1380, -inf
        %1385 = vmax.xlane.f32.xlu0 %v1384
        %v1386 = vpop.xlane.xlu0 %1385
        %v1387 = vsub.f32 %v1379, %v1383
        %v1388 = vsub.f32 %v1380, %v1386
        %v1389 = vmul.f32 %v1387, 1.442695
        %v1390 = vpow.pop %v1389
        %v1391 = vmul.f32 %v1388, 1.442695
        %v1392 = vpow.pop %v1391
        %v1393 = vsel %vm506, %v1390, 0.0
        %1394 = vadd.xlane.f32.xlu0 %v1393
        %v1395 = vpop.xlane.xlu0 %1394
        %v1396 = vsel %vm506, %v1392, 0.0
        %1397 = vadd.xlane.f32.xlu0 %v1396
        %v1398 = vpop.xlane.xlu0 %1397
        %v1399 = vrcp.pop %v1395
        %v1400 = vmul.f32 %v1395, %v1399
        %v1401 = vsub.f32 1.0, %v1400
        %v1402 = vmul.f32 %v1399, %v1401
        %v1403 = vadd.f32 %v1399, %v1402
        %vm1404 = vweird.f32 %v1395
        %vm1405 = vweird.f32 %v1399
        %vm1406 = vmor %vm1404, %vm1405
        %v1407 = vsel %vm1406, %v1399, %v1403
        %v1408 = vand.u32 2147483647, %v1395
        %vm1409 = vcmp.eq.f32.partialorder %v1408, 8.507059e+37
        %v1410 = vand.u32 %v1395, 2147483648
        %v1411 = vor.u32 1.1754944e-38, %v1410
        %v1412 = vsel %vm1409, %v1411, %v1407
        %v1413 = vrcp.pop %v1398
        %v1414 = vmul.f32 %v1398, %v1413
        %v1415 = vsub.f32 1.0, %v1414
        %v1416 = vmul.f32 %v1413, %v1415
        %v1417 = vadd.f32 %v1413, %v1416
        %vm1418 = vweird.f32 %v1398
        %vm1419 = vweird.f32 %v1413
        %vm1420 = vmor %vm1418, %vm1419
        %v1421 = vsel %vm1420, %v1413, %v1417
        %v1422 = vand.u32 2147483647, %v1398
        %vm1423 = vcmp.eq.f32.partialorder %v1422, 8.507059e+37
        %v1424 = vand.u32 %v1398, 2147483648
        %v1425 = vor.u32 1.1754944e-38, %v1424
        %v1426 = vsel %vm1423, %v1425, %v1421
        %v1427 = vmul.f32 %v1390, %v1412
        %v1428 = vmul.f32 %v1392, %v1426
        %v1430 = vsel %vm506, %v1427, 0
        %1432 = vmatpush.msra.mxu0 0.0
        %1433 = vmatpush.msra.mxu0 0.0
        %1434 = vmatpush.msra.mxu0 0.0
        %1435 = vmatpush.msra.mxu0 0.0
        %1436 = vmatpush.msra.mxu0 0.0
        %1437 = vmatpush.msra.mxu0 0.0
        %1438 = vmatpush.msra.mxu0 0.0
        %1439 = vmatpush.msra.mxu0 0.0
        %1440 = vmatpush.msra.mxu0 0.0
        %1441 = vmatpush.msra.mxu0 0.0
        %1442 = vmatpush.msra.mxu0 0.0
        %1443 = vmatpush.msra.mxu0 0.0
        %1444 = vmatpush.msra.mxu0 0.0
        %1445 = vmatpush.msra.mxu0 0.0
        %1446 = vmatpush.msra.mxu0 0.0
        %1447 = vmatpush.msra.mxu0 %v1322
        %1448 = vmatmul.f32.gmra.mxu0 %v1430
        %v1449 = vpop.f32.mrf.mxu0
        %v1450 = vadd.f32 0.0, %v1449
        %1451 = vdwg.mxu0
        %v1453 = vsel %vm506, %v1428, 0
        %1455 = vmatpush.msra.mxu0 0.0
        %1456 = vmatpush.msra.mxu0 0.0
        %1457 = vmatpush.msra.mxu0 0.0
        %1458 = vmatpush.msra.mxu0 0.0
        %1459 = vmatpush.msra.mxu0 0.0
        %1460 = vmatpush.msra.mxu0 0.0
        %1461 = vmatpush.msra.mxu0 0.0
        %1462 = vmatpush.msra.mxu0 0.0
        %1463 = vmatpush.msra.mxu0 0.0
        %1464 = vmatpush.msra.mxu0 0.0
        %1465 = vmatpush.msra.mxu0 0.0
        %1466 = vmatpush.msra.mxu0 0.0
        %1467 = vmatpush.msra.mxu0 0.0
        %1468 = vmatpush.msra.mxu0 0.0
        %1469 = vmatpush.msra.mxu0 0.0
        %1470 = vmatpush.msra.mxu0 %v1325
        %1471 = vmatmul.f32.gmra.mxu0 %v1453
        %v1472 = vpop.f32.mrf.mxu0
        %v1473 = vadd.f32 0.0, %v1472
        %1474 = vdwg.mxu0
        %s1475 = scalar_lea.vmem %s379, 24
        %v1476 = vld [vmem:[%s1475] sm:$0xff]
        %v1478 = vsel %vm506, %v1450, 0
        %v1481 = vsel %vm506, %v1473, 0
        %1483 = vmatpush.msra.mxu0 0.0
        %1484 = vmatpush.msra.mxu0 0.0
        %1485 = vmatpush.msra.mxu0 0.0
        %1486 = vmatpush.msra.mxu0 0.0
        %1487 = vmatpush.msra.mxu0 0.0
        %1488 = vmatpush.msra.mxu0 0.0
        %1489 = vmatpush.msra.mxu0 0.0
        %1490 = vmatpush.msra.mxu0 0.0
        %1491 = vmatpush.msra.mxu0 0.0
        %1492 = vmatpush.msra.mxu0 0.0
        %1493 = vmatpush.msra.mxu0 0.0
        %1494 = vmatpush.msra.mxu0 0.0
        %1495 = vmatpush.msra.mxu0 0.0
        %1496 = vmatpush.msra.mxu0 0.0
        %1497 = vmatpush.msra.mxu0 0.0
        %1498 = vmatpush.msra.mxu0 %v1476
        %1499 = vmatmul.f32.gmra.mxu0 %v1478
        %v1500 = vpop.f32.mrf.mxu0
        %v1501 = vadd.f32 0.0, %v1500
        %1502 = vmatmul.f32.gmra.mxu0 %v1481
        %v1503 = vpop.f32.mrf.mxu0
        %v1504 = vadd.f32 0.0, %v1503
        %1505 = vdwg.mxu0
        %v1506 = vadd.f32 %v1232, %v1501
        %v1507 = vadd.f32 %v1233, %v1504
        %v1508 = vperm.slane %v410, 3
        %v1509 = vadd.f32 %v1506, %v1508
        %v1510 = vadd.f32 %v1507, %v1508
        %v1511 = vadd.f32 %v408, %v1509
        %v1512 = vadd.f32 %v409, %v1510
        %v1513 = vsel %vm418, %v1511, 0.0
        %1514 = vadd.xlane.f32.xlu0 %v1513
        %v1515 = vpop.xlane.xlu0 %1514
        %v1516 = vsel %vm418, %v1512, 0.0
        %1517 = vadd.xlane.f32.xlu0 %v1516
        %v1518 = vpop.xlane.xlu0 %1517
        %v1519 = vrcp.pop 32.0
        %v1520 = vmul.f32 32.0, %v1519
        %v1521 = vsub.f32 1.0, %v1520
        %v1522 = vmul.f32 %v1519, %v1521
        %v1523 = vadd.f32 %v1519, %v1522
        %vm1524 = vweird.f32 %v1519
        %v1525 = vsel %vm1524, %v1519, %v1523
        %v1526 = vmul.f32 %v1515, %v1525
        %v1527 = vmul.f32 %v1518, %v1525
        %v1528 = vsub.f32 %v1511, %v1526
        %v1529 = vsub.f32 %v1512, %v1527
        %v1530 = vmul.f32 %v1528, %v1528
        %v1531 = vmul.f32 %v1529, %v1529
        %v1532 = vsel %vm418, %v1530, 0.0
        %1533 = vadd.xlane.f32.xlu0 %v1532
        %v1534 = vpop.xlane.xlu0 %1533
        %v1535 = vsel %vm418, %v1531, 0.0
        %1536 = vadd.xlane.f32.xlu0 %v1535
        %v1537 = vpop.xlane.xlu0 %1536
        %v1538 = vmul.f32 %v1534, %v1525
        %v1539 = vmul.f32 %v1537, %v1525
        %v1540 = vadd.f32 %v1538, 1e-05
        %v1541 = vadd.f32 %v1539, 1e-05
        %v1542 = vrsqrt.pop %v1540
        %v1543 = vmul.f32 %v1542, %v1540
        %v1544 = vmul.f32 %v1543, %v1542
        %v1545 = vmul.f32 0.5, %v1544
        %v1546 = vsub.f32 1.5, %v1545
        %v1547 = vmul.f32 %v1542, %v1546
        %vm1548 = vweird.f32 %v1540
        %vm1549 = vweird.f32 %v1542
        %vm1550 = vmor %vm1548, %vm1549
        %v1551 = vsel %vm1550, %v1542, %v1547
        %v1552 = vrsqrt.pop %v1541
        %v1553 = vmul.f32 %v1552, %v1541
        %v1554 = vmul.f32 %v1553, %v1552
        %v1555 = vmul.f32 0.5, %v1554
        %v1556 = vsub.f32 1.5, %v1555
        %v1557 = vmul.f32 %v1552, %v1556
        %vm1558 = vweird.f32 %v1541
        %vm1559 = vweird.f32 %v1552
        %vm1560 = vmor %vm1558, %vm1559
        %v1561 = vsel %vm1560, %v1552, %v1557
        %v1562 = vmul.f32 %v1528, %v1551
        %v1563 = vmul.f32 %v1529, %v1561
        %v1564 = vperm.slane %v410, 4
        %v1565 = vmul.f32 %v1562, %v1564
        %v1566 = vmul.f32 %v1563, %v1564
        %v1567 = vperm.slane %v410, 5
        %v1568 = vadd.f32 %v1565, %v1567
        %v1569 = vadd.f32 %v1566, %v1567
        %v1570 = vld [vmem:[%s384] sm:$0xff]
        %v1571 = vld [vmem:[%s384 + $0x8] sm:$0xff]
        %v1572 = vld [vmem:[%s384 + $0x10] sm:$0xff]
        %v1573 = vld [vmem:[%s384 + $0x18] sm:$0xff]
        %v1575 = vperm.slane %v412, 0
        %v1578 = vsel %vm418, %v1568, 0
        %v1581 = vsel %vm418, %v1569, 0
        %1583 = vmatpush.msra.mxu0 0.0
        %1584 = vmatpush.msra.mxu0 0.0
        %1585 = vmatpush.msra.mxu0 0.0
        %1586 = vmatpush.msra.mxu0 0.0
        %1587 = vmatpush.msra.mxu0 0.0
        %1588 = vmatpush.msra.mxu0 0.0
        %1589 = vmatpush.msra.mxu0 0.0
        %1590 = vmatpush.msra.mxu0 0.0
        %1591 = vmatpush.msra.mxu0 0.0
        %1592 = vmatpush.msra.mxu0 0.0
        %1593 = vmatpush.msra.mxu0 0.0
        %1594 = vmatpush.msra.mxu0 0.0
        %1595 = vmatpush.msra.mxu0 %v1573
        %1596 = vmatpush.msra.mxu0 %v1572
        %1597 = vmatpush.msra.mxu0 %v1571
        %1598 = vmatpush.msra.mxu0 %v1570
        %1599 = vmatmul.f32.gmra.mxu0 %v1578
        %v1600 = vpop.f32.mrf.mxu0
        %v1601 = vadd.f32 %v1575, %v1600
        %1602 = vmatmul.f32.gmra.mxu0 %v1581
        %v1603 = vpop.f32.mrf.mxu0
        %v1604 = vadd.f32 %v1575, %v1603
        %1605 = vdwg.mxu0
        %v1606 = vmax.f32 %v1601, 0.0
        %v1607 = vmax.f32 %v1604, 0.0
        %v1608 = vld [vmem:[%s389] sm:$0xff]
        %v1609 = vld [vmem:[%s389 + $0x8] sm:$0xff]
        %v1610 = vld [vmem:[%s389 + $0x10] sm:$0xff]
        %v1611 = vld [vmem:[%s389 + $0x18] sm:$0xff]
        %v1612 = vperm.slane %v410, 6
        %v1614 = vsel %vm418, %v1606, 0
        %v1617 = vsel %vm418, %v1607, 0
        %1619 = vmatpush.msra.mxu0 0.0
        %1620 = vmatpush.msra.mxu0 0.0
        %1621 = vmatpush.msra.mxu0 0.0
        %1622 = vmatpush.msra.mxu0 0.0
        %1623 = vmatpush.msra.mxu0 0.0
        %1624 = vmatpush.msra.mxu0 0.0
        %1625 = vmatpush.msra.mxu0 0.0
        %1626 = vmatpush.msra.mxu0 0.0
        %1627 = vmatpush.msra.mxu0 0.0
        %1628 = vmatpush.msra.mxu0 0.0
        %1629 = vmatpush.msra.mxu0 0.0
        %1630 = vmatpush.msra.mxu0 0.0
        %1631 = vmatpush.msra.mxu0 %v1611
        %1632 = vmatpush.msra.mxu0 %v1610
        %1633 = vmatpush.msra.mxu0 %v1609
        %1634 = vmatpush.msra.mxu0 %v1608
        %1635 = vmatmul.f32.gmra.mxu0 %v1614
        %v1636 = vpop.f32.mrf.mxu0
        %v1637 = vadd.f32 %v1612, %v1636
        %1638 = vmatmul.f32.gmra.mxu0 %v1617
        %v1639 = vpop.f32.mrf.mxu0
        %v1640 = vadd.f32 %v1612, %v1639
        %1641 = vdwg.mxu0
        %v1642 = vadd.f32 %v1568, %v1637
        %v1643 = vadd.f32 %v1569, %v1640
        %v1644 = vsel %vm418, %v1642, 0.0
        %1645 = vadd.xlane.f32.xlu0 %v1644
        %v1646 = vpop.xlane.xlu0 %1645
        %v1647 = vsel %vm418, %v1643, 0.0
        %1648 = vadd.xlane.f32.xlu0 %v1647
        %v1649 = vpop.xlane.xlu0 %1648
        %v1650 = vmul.f32 %v1646, %v1525
        %v1651 = vmul.f32 %v1649, %v1525
        %v1652 = vsub.f32 %v1642, %v1650
        %v1653 = vsub.f32 %v1643, %v1651
        %v1654 = vmul.f32 %v1652, %v1652
        %v1655 = vmul.f32 %v1653, %v1653
        %v1656 = vsel %vm418, %v1654, 0.0
        %1657 = vadd.xlane.f32.xlu0 %v1656
        %v1658 = vpop.xlane.xlu0 %1657
        %v1659 = vsel %vm418, %v1655, 0.0
        %1660 = vadd.xlane.f32.xlu0 %v1659
        %v1661 = vpop.xlane.xlu0 %1660
        %v1662 = vmul.f32 %v1658, %v1525
        %v1663 = vmul.f32 %v1661, %v1525
        %v1664 = vadd.f32 %v1662, 1e-05
        %v1665 = vadd.f32 %v1663, 1e-05
        %v1666 = vrsqrt.pop %v1664
        %v1667 = vmul.f32 %v1666, %v1664
        %v1668 = vmul.f32 %v1667, %v1666
        %v1669 = vmul.f32 0.5, %v1668
        %v1670 = vsub.f32 1.5, %v1669
        %v1671 = vmul.f32 %v1666, %v1670
        %vm1672 = vweird.f32 %v1664
        %vm1673 = vweird.f32 %v1666
        %vm1674 = vmor %vm1672, %vm1673
        %v1675 = vsel %vm1674, %v1666, %v1671
        %v1676 = vrsqrt.pop %v1665
        %v1677 = vmul.f32 %v1676, %v1665
        %v1678 = vmul.f32 %v1677, %v1676
        %v1679 = vmul.f32 0.5, %v1678
        %v1680 = vsub.f32 1.5, %v1679
        %v1681 = vmul.f32 %v1676, %v1680
        %vm1682 = vweird.f32 %v1665
        %vm1683 = vweird.f32 %v1676
        %vm1684 = vmor %vm1682, %vm1683
        %v1685 = vsel %vm1684, %v1676, %v1681
        %v1686 = vmul.f32 %v1652, %v1675
        %v1687 = vmul.f32 %v1653, %v1685
        %v1688 = vperm.slane %v410, 7
        %v1689 = vmul.f32 %v1686, %v1688
        %v1690 = vmul.f32 %v1687, %v1688
        %v1691 = vperm.slane %v411, 0
        %v1692 = vadd.f32 %v1689, %v1691
        %v1693 = vadd.f32 %v1690, %v1691
        %1694 = vst.msk [vmem:[#allocation2] sm:$0xff] %vm418, %v1692
        %1695 = vst.msk [vmem:[#allocation2 + $0x8] sm:$0xff] %vm418, %v1693
        %p1696 = scmp.eq.s32.totalorder %s24, 1
        // Predicated region
        $region53: #{tpu_custom_call.1} parent=47 // pred_check
          %p1697 = pneg %p1696
        $region54: #{tpu_custom_call.1} parent=47 // pred_check_branch
          %1699 = sbr.rel (%p1697) target = $region56
        $region55: #{tpu_custom_call.1} parent=47 // pred_region
          %v1700 = vld [vmem:[#allocation2] sm:$0xff]
          %v1701 = vld [vmem:[#allocation2 + $0x8] sm:$0xff]
          %1702 = vst.msk [vmem:[#allocation3] sm:$0xff] %vm418, %v1700
          %1703 = vst.msk [vmem:[#allocation3 + $0x8] sm:$0xff] %vm418, %v1701
        $region56: #{tpu_custom_call.1} parent=47 // pred_fallthru
          _
        // Predicated region
        $region57: #{tpu_custom_call.1} parent=47 // pred_check
          %p1704 = pneg %p231
        $region58: #{tpu_custom_call.1} parent=47 // pred_check_branch
          %1706 = sbr.rel (%p1704) target = $region60
        $region59: #{tpu_custom_call.1} parent=47 // pred_region
          %s1707 = smul.u32 2, %s23
          %1709 = vsyncadd [#allocation4], 0
          %s1710 = smul.addr %s1707, 8
          %s1711 = scalar_lea.hbm %s7, %s1710
          %s1712 = sshll.u32 [#allocation3], 4
          %s1713 = int_to_ptr.vmem [resolvable:$true] %s1712
          %s1714 = sshll.u32 %s1711, 4
          %s1715 = int_to_ptr.hbm [resolvable:$true] %s1714
          %1720 = dma.vmem_to_hbm [thread:$0]  %s1713, 256, %s1715, [#allocation4], 128, 128, 8
        $region60: #{tpu_custom_call.1} parent=47 // pred_fallthru
          _
        // Predicated region
        $region61: #{tpu_custom_call.1} parent=47 // pred_check
          %p1721 = pneg %p231
        $region62: #{tpu_custom_call.1} parent=47 // pred_check_branch
          %1723 = sbr.rel (%p1721) target = $region64
        $region63: #{tpu_custom_call.1} parent=47 // pred_region
          %1725 = dma.done [#allocation4], 256
        $region64: #{tpu_custom_call.1} parent=47 // pred_fallthru
          _
      $region48: #{tpu_custom_call.1} parent=5 // pred_fallthru
        _
      %p1726 = scmp.le.s32.totalorder 2, %s14
      // Predicated region
      $region65: #{tpu_custom_call.1} parent=5 // pred_check
        %p1727 = pneg %p1726
      $region66: #{tpu_custom_call.1} parent=5 // pred_check_branch
        %1729 = sbr.rel (%p1727) target = $region68
      $region67: #{tpu_custom_call.1} parent=5 // pred_region
        %s1730 = ssub.s32 %s14, 2
      $region68: #{tpu_custom_call.1} parent=5 // pred_fallthru
        _
    $region6: #{tpu_custom_call.1} parent=1 // loop_footer
      %s18 = sadd.s32 1, %s14
    $region7: #{tpu_custom_call.1} parent=1 // loop_footer_branch
      %13 = sbr.rel target = $region3
    $region8: #{tpu_custom_call.1} parent=1 // loop_exit
      _
    %1731 = vsyncpa [#allocation4], 1
    %s1732 = scalar_lea.sflag [#allocation4], 1
    %1733 = vsyncpa %s1732, 1

</llo_original>
